<compile_context>
chip_gen: v6e
topology: v6e:2x2x1
jax: 0.10.0
libtpu: 0.0.40
codegen_flags: <defaults>
</compile_context>

<pallas_src>
import numpy as np
import jax
import jax.numpy as jnp
from jax.experimental import pallas as pl
from jax.experimental.pallas import tpu as pltpu

# ---- module hyper-parameters (from the PyTorch script) -----------------------
ALPHA = 0.1
INPUT_SIZE = 3
BASE_HIDDEN = [5, 5]
N_CLASSES = 2
Z_DIM = 3                       # == num_ensemble
EPI_HIDDENS = [8, 8]
PRIOR_HIDDENS = [2, 2]

BASE_SIZES = [INPUT_SIZE] + BASE_HIDDEN + [N_CLASSES]               # [3, 5, 5, 2]
EXPOSED = [True] + [False, True] + [False]                          # [T, F, T, F]
SUM_EXPOSED = sum(s for s, f in zip(BASE_SIZES, EXPOSED) if f)      # 3 + 5 = 8
EPI_SIZES = [SUM_EXPOSED + Z_DIM] + EPI_HIDDENS + [N_CLASSES * Z_DIM]  # [11,8,8,6]
PRIOR_SIZES = [SUM_EXPOSED] + PRIOR_HIDDENS + [N_CLASSES]           # [8, 2, 2, 2]

PH = PRIOR_HIDDENS[0]           # 2
FUSED_H = Z_DIM * PH            # 6 : fused prior hidden width


def _round_up(n, m):
    return ((n + m - 1) // m) * m


# ---- Pallas kernel: one batch tile per grid step ------------------------------
def enn_kernel(x_ref,
               bw0, bb0, bw1, bb1, bw2, bb2,              # basenet  (3,5)(5,5)(5,2)
               ew0x, ew0a, eb0, ew1, eb1, ew2, eb2, zblk,  # epinet, z pre-folded
               pw0x, pw0a, pb0, pw1, pb1, pw2, pb2,        # fused ensemble prior
               out_ref):
    f32 = jnp.float32
    x = x_ref[...]                                                           # (TB, 3)

    # ----- basenet -----
    a1 = jnp.maximum(jnp.dot(x,  bw0[...], preferred_element_type=f32) + bb0[...], 0.0)  # (TB,5)
    a2 = jnp.maximum(jnp.dot(a1, bw1[...], preferred_element_type=f32) + bb1[...], 0.0)  # (TB,5)
    base = jnp.dot(a2, bw2[...], preferred_element_type=f32) + bb2[...]                  # (TB,2)

    # ----- learnable epinet -----
    # epinet input is concat([x, a2, z_rep]); the z part is constant across the
    # batch and was folded into eb0 on the host, the rest is split matmuls
    # (chained dot+dot keeps MRB accumulation available on v7x).
    e1 = jnp.maximum(jnp.dot(x,  ew0x[...], preferred_element_type=f32)
                     + jnp.dot(a2, ew0a[...], preferred_element_type=f32)
                     + eb0[...], 0.0)                                        # (TB,8)
    e2 = jnp.maximum(jnp.dot(e1, ew1[...], preferred_element_type=f32) + eb1[...], 0.0)  # (TB,8)
    e3 = jnp.dot(e2, ew2[...], preferred_element_type=f32) + eb2[...]        # (TB,6)
    # reshape(B, n_classes, z_dim) @ z  ==  one matmul against block-diag z
    epi = jnp.dot(e3, zblk[...], preferred_element_type=f32)                 # (TB,2)

    # ----- frozen ensemble prior, fused into one MLP -----
    p1 = jnp.maximum(jnp.dot(x,  pw0x[...], preferred_element_type=f32)
                     + jnp.dot(a2, pw0a[...], preferred_element_type=f32)
                     + pb0[...], 0.0)                                        # (TB,6)
    p2 = jnp.maximum(jnp.dot(p1, pw1[...], preferred_element_type=f32) + pb1[...], 0.0)  # (TB,6)
    prior = jnp.dot(p2, pw2[...], preferred_element_type=f32) + pb2[...]     # (TB,2) (z already folded)

    out_ref[...] = base + epi + ALPHA * prior


# ---- host-side z-folding / fusion of the raw module parameters ----------------
def pack_params(z, params):
    (bw0, bb0, bw1, bb1, bw2, bb2,
     ew0, eb0, ew1, eb1, ew2, eb2,
     pw0, pb0, pw1, pb1, pw2, pb2) = params
    f32 = jnp.float32
    z = z.astype(f32)

    # epinet first layer: split weight by [x | a2 | z]; fold the z rows into the bias.
    ew0x = ew0[0:INPUT_SIZE, :]                                   # (3, 8)
    ew0a = ew0[INPUT_SIZE:SUM_EXPOSED, :]                         # (5, 8)
    eb0_eff = eb0 + z[None, :] @ ew0[SUM_EXPOSED:, :]             # (1, 8)

    # epinet head: zblk[c*Z_DIM + n, c] = z[n]  ->  e3 @ zblk == reshape(B,2,3) @ z
    zblk = jnp.kron(jnp.eye(N_CLASSES, dtype=f32), z[:, None])    # (6, 2)

    # fused ensemble prior
    pw0f = jnp.concatenate(list(pw0), axis=1)                     # (8, 6)
    pb0f = jnp.concatenate([pb0[n] for n in range(Z_DIM)], axis=1)  # (1, 6)
    pw0x = pw0f[0:INPUT_SIZE, :]                                  # (3, 6)
    pw0a = pw0f[INPUT_SIZE:SUM_EXPOSED, :]                        # (5, 6)

    pw1f = jnp.zeros((FUSED_H, FUSED_H), f32)                     # block_diag of the (2,2) blocks
    for n in range(Z_DIM):
        pw1f = pw1f.at[n * PH:(n + 1) * PH, n * PH:(n + 1) * PH].set(pw1[n])
    pb1f = jnp.concatenate([pb1[n] for n in range(Z_DIM)], axis=1)  # (1, 6)

    pw2f = jnp.concatenate([pw2[n] * z[n] for n in range(Z_DIM)], axis=0)  # (6, 2)
    pb2f = sum(pb2[n] * z[n] for n in range(Z_DIM))               # (1, 2)

    return (bw0, bb0, bw1, bb1, bw2, bb2,
            ew0x, ew0a, eb0_eff, ew1, eb1, ew2, eb2, zblk,
            pw0x, pw0a, pb0f, pw1f, pb1f, pw2f, pb2f)


# ---- wrapper -------------------------------------------------------------------
def enn_forward(x, z, params, tb=512):
    packed = pack_params(z, params)

    B = x.shape[0]
    # tile: multiple of 8, capped at 512 rows so a tile + double buffers stay well
    # inside the 16 MiB (v5e) / 32 MiB (v6e, v7x) default scoped-VMEM limits.
    TB = min(tb, _round_up(max(B, 1), 8))
    B_pad = _round_up(B, TB)
    if B_pad != B:
        x = jnp.pad(x, ((0, B_pad - B), (0, 0)))
    grid = (B_pad // TB,)

    x_spec = pl.BlockSpec((TB, INPUT_SIZE), lambda i: (i, 0))
    out_spec = pl.BlockSpec((TB, N_CLASSES), lambda i: (i, 0))
    # tiny weights: whole-array blocks, constant index_map -> stay VMEM-resident.
    w_specs = [pl.BlockSpec(p.shape, lambda i: (0, 0)) for p in packed]

    # memory-bound cost hint (contraction dims are all <= 8).
    macs_per_row = (3 * 5 + 5 * 5 + 5 * 2            # basenet
                    + 3 * 8 + 5 * 8 + 8 * 8 + 8 * 6 + 6 * 2   # epinet + head
                    + 3 * 6 + 5 * 6 + 6 * 6 + 6 * 2)          # fused prior
    param_bytes = int(sum(int(np.prod(p.shape)) for p in packed) * 4)
    cost = pl.CostEstimate(
        flops=int(2 * macs_per_row * B_pad),
        transcendentals=0,
        bytes_accessed=int(B_pad * (INPUT_SIZE + N_CLASSES) * 4 + param_bytes),
    )

    out = pl.pallas_call(
        enn_kernel,
        out_shape=jax.ShapeDtypeStruct((B_pad, N_CLASSES), jnp.float32),
        grid=grid,
        in_specs=[x_spec] + w_specs,
        out_specs=out_spec,
        compiler_params=pltpu.CompilerParams(dimension_semantics=("parallel",)),
        cost_estimate=cost,
    )(x, *packed)
    return out[:B]


# ---- deterministic parameter construction (synthetic init, no checkpoint) ----
def _linear_init(key, fan_in, fan_out):
    # mimics torch.nn.Linear default init: U(-1/sqrt(fan_in), +1/sqrt(fan_in))
    kw, kb = jax.random.split(key)
    bound = 1.0 / np.sqrt(fan_in)
    w = jax.random.uniform(kw, (fan_in, fan_out), jnp.float32, -bound, bound)
    b = jax.random.uniform(kb, (1, fan_out), jnp.float32, -bound, bound)
    return w, b


def _xavier_init(key, fan_in, fan_out):
    bound = np.sqrt(6.0 / (fan_in + fan_out))
    w = jax.random.uniform(key, (fan_in, fan_out), jnp.float32, -bound, bound)
    b = jnp.zeros((1, fan_out), jnp.float32)
    return w, b


def make_params(key):
    keys = jax.random.split(key, 3 + 3 + Z_DIM * 3)
    k = iter(keys)
    base = []
    for i in range(len(BASE_SIZES) - 1):
        base.extend(_linear_init(next(k), BASE_SIZES[i], BASE_SIZES[i + 1]))
    epi = []
    for j in range(len(EPI_SIZES) - 1):
        epi.extend(_linear_init(next(k), EPI_SIZES[j], EPI_SIZES[j + 1]))
    # ensemble prior: Z_DIM frozen MLPs, stacked along a leading axis
    pw, pb = [[] for _ in range(3)], [[] for _ in range(3)]
    for _ in range(Z_DIM):
        for i in range(len(PRIOR_SIZES) - 1):
            w, b = _xavier_init(next(k), PRIOR_SIZES[i], PRIOR_SIZES[i + 1])
            pw[i].append(w)
            pb[i].append(b)
    prior = []
    for i in range(3):
        prior.append(jnp.stack(pw[i], axis=0))   # (Z_DIM, in, out)
        prior.append(jnp.stack(pb[i], axis=0))   # (Z_DIM, 1, out)
    return tuple(base + epi + prior)


# ---- pure-JAX reference (mirrors the PyTorch forward, un-fused params) ---------
def reference_forward(x, z, params):
    (bw0, bb0, bw1, bb1, bw2, bb2,
     ew0, eb0, ew1, eb1, ew2, eb2,
     pw0, pb0, pw1, pb1, pw2, pb2) = params
    B = x.shape[0]
    h0 = x
    a1 = jax.nn.relu(x @ bw0 + bb0)
    a2 = jax.nn.relu(a1 @ bw1 + bb1)
    base = a2 @ bw2 + bb2
    hidden = jnp.concatenate([h0, a2], axis=1)                      # (B, 8)
    z_rep = jnp.broadcast_to(z[None, :], (B, Z_DIM))
    comb = jnp.concatenate([hidden, z_rep], axis=1)                 # (B, 11)
    e = jax.nn.relu(comb @ ew0 + eb0)
    e = jax.nn.relu(e @ ew1 + eb1)
    e = e @ ew2 + eb2                                               # (B, 6)
    epi = jnp.einsum('bcn,n->bc', e.reshape(B, N_CLASSES, Z_DIM), z)
    priors = []
    for n in range(Z_DIM):
        h = jax.nn.relu(hidden @ pw0[n] + pb0[n][0])
        h = jax.nn.relu(h @ pw1[n] + pb1[n][0])
        priors.append(h @ pw2[n] + pb2[n][0])
    prior = jnp.einsum('nbo,n->bo', jnp.stack(priors, axis=0), z)
    return base + epi + ALPHA * prior


if __name__ == "__main__":
    key = jax.random.PRNGKey(0)
    kx, kz, kp = jax.random.split(key, 3)
    x = jax.random.normal(kx, (5, INPUT_SIZE), jnp.float32)   # matches torch.randn(5, 3)
    z = jax.random.normal(kz, (Z_DIM,), jnp.float32)          # matches torch.randn(3)
    params = make_params(kp)

    out = enn_forward(x, z, params)
    out = jax.block_until_ready(out)

    ref = reference_forward(x, z, params)
    np.testing.assert_allclose(np.asarray(out), np.asarray(ref), rtol=1e-5, atol=1e-5)
    print("KERNEL_OK")
</pallas_src>

<mosaic_0001>
module attributes {stable_mosaic.version = 11 : i64} {
  func.func @enn_kernel(%arg0: i32, %arg1: memref<8x3xf32, #tpu.memory_space<vmem>>, %arg2: memref<3x5xf32, #tpu.memory_space<vmem>>, %arg3: memref<1x5xf32, #tpu.memory_space<vmem>>, %arg4: memref<5x5xf32, #tpu.memory_space<vmem>>, %arg5: memref<1x5xf32, #tpu.memory_space<vmem>>, %arg6: memref<5x2xf32, #tpu.memory_space<vmem>>, %arg7: memref<1x2xf32, #tpu.memory_space<vmem>>, %arg8: memref<3x8xf32, #tpu.memory_space<vmem>>, %arg9: memref<5x8xf32, #tpu.memory_space<vmem>>, %arg10: memref<1x8xf32, #tpu.memory_space<vmem>>, %arg11: memref<8x8xf32, #tpu.memory_space<vmem>>, %arg12: memref<1x8xf32, #tpu.memory_space<vmem>>, %arg13: memref<8x6xf32, #tpu.memory_space<vmem>>, %arg14: memref<1x6xf32, #tpu.memory_space<vmem>>, %arg15: memref<6x2xf32, #tpu.memory_space<vmem>>, %arg16: memref<3x6xf32, #tpu.memory_space<vmem>>, %arg17: memref<5x6xf32, #tpu.memory_space<vmem>>, %arg18: memref<1x6xf32, #tpu.memory_space<vmem>>, %arg19: memref<6x6xf32, #tpu.memory_space<vmem>>, %arg20: memref<1x6xf32, #tpu.memory_space<vmem>>, %arg21: memref<6x2xf32, #tpu.memory_space<vmem>>, %arg22: memref<1x2xf32, #tpu.memory_space<vmem>>, %arg23: memref<8x2xf32, #tpu.memory_space<vmem>>) attributes {dimension_semantics = [#tpu.dimension_semantics<parallel>], iteration_bounds = array<i64: 1>, scalar_prefetch = 0 : i64, scratch_operands = 0 : i64, tpu.core_type = #tpu.core_type<tc>, window_params = [{transform_indices = @transform_0, window_bounds = array<i64: 8, 3>}, {pipeline_mode = #tpu.pipeline_mode<synchronous>, transform_indices = @transform_1, window_bounds = array<i64: 3, 5>}, {pipeline_mode = #tpu.pipeline_mode<synchronous>, transform_indices = @transform_2, window_bounds = array<i64: 1, 5>}, {pipeline_mode = #tpu.pipeline_mode<synchronous>, transform_indices = @transform_3, window_bounds = array<i64: 5, 5>}, {pipeline_mode = #tpu.pipeline_mode<synchronous>, transform_indices = @transform_4, window_bounds = array<i64: 1, 5>}, {pipeline_mode = #tpu.pipeline_mode<synchronous>, transform_indices = @transform_5, window_bounds = array<i64: 5, 2>}, {pipeline_mode = #tpu.pipeline_mode<synchronous>, transform_indices = @transform_6, window_bounds = array<i64: 1, 2>}, {pipeline_mode = #tpu.pipeline_mode<synchronous>, transform_indices = @transform_7, window_bounds = array<i64: 3, 8>}, {pipeline_mode = #tpu.pipeline_mode<synchronous>, transform_indices = @transform_8, window_bounds = array<i64: 5, 8>}, {pipeline_mode = #tpu.pipeline_mode<synchronous>, transform_indices = @transform_9, window_bounds = array<i64: 1, 8>}, {pipeline_mode = #tpu.pipeline_mode<synchronous>, transform_indices = @transform_10, window_bounds = array<i64: 8, 8>}, {pipeline_mode = #tpu.pipeline_mode<synchronous>, transform_indices = @transform_11, window_bounds = array<i64: 1, 8>}, {pipeline_mode = #tpu.pipeline_mode<synchronous>, transform_indices = @transform_12, window_bounds = array<i64: 8, 6>}, {pipeline_mode = #tpu.pipeline_mode<synchronous>, transform_indices = @transform_13, window_bounds = array<i64: 1, 6>}, {pipeline_mode = #tpu.pipeline_mode<synchronous>, transform_indices = @transform_14, window_bounds = array<i64: 6, 2>}, {pipeline_mode = #tpu.pipeline_mode<synchronous>, transform_indices = @transform_15, window_bounds = array<i64: 3, 6>}, {pipeline_mode = #tpu.pipeline_mode<synchronous>, transform_indices = @transform_16, window_bounds = array<i64: 5, 6>}, {pipeline_mode = #tpu.pipeline_mode<synchronous>, transform_indices = @transform_17, window_bounds = array<i64: 1, 6>}, {pipeline_mode = #tpu.pipeline_mode<synchronous>, transform_indices = @transform_18, window_bounds = array<i64: 6, 6>}, {pipeline_mode = #tpu.pipeline_mode<synchronous>, transform_indices = @transform_19, window_bounds = array<i64: 1, 6>}, {pipeline_mode = #tpu.pipeline_mode<synchronous>, transform_indices = @transform_20, window_bounds = array<i64: 6, 2>}, {pipeline_mode = #tpu.pipeline_mode<synchronous>, transform_indices = @transform_21, window_bounds = array<i64: 1, 2>}, {transform_indices = @transform_22, window_bounds = array<i64: 8, 2>}]} {
    %c0 = arith.constant 0 : index
    %c0_0 = arith.constant 0 : index
    %0 = vector.load %arg1[%c0, %c0_0] : memref<8x3xf32, #tpu.memory_space<vmem>>, vector<8x3xf32>
    %c0_1 = arith.constant 0 : index
    %c0_2 = arith.constant 0 : index
    %1 = vector.load %arg2[%c0_1, %c0_2] : memref<3x5xf32, #tpu.memory_space<vmem>>, vector<3x5xf32>
    %cst = arith.constant dense<0.000000e+00> : vector<8x5xf32>
    %2 = tpu.matmul %0, %1, %cst {dimension_numbers = #tpu.dot_dimension_numbers<[1], [0], [0], [1], [0, 0, 1, 1], [], []>} : vector<8x3xf32>, vector<3x5xf32>, vector<8x5xf32> -> vector<8x5xf32>
    %c0_3 = arith.constant 0 : index
    %c0_4 = arith.constant 0 : index
    %3 = vector.load %arg3[%c0_3, %c0_4] : memref<1x5xf32, #tpu.memory_space<vmem>>, vector<1x5xf32>
    %4 = vector.broadcast %3 : vector<1x5xf32> to vector<8x5xf32>
    %5 = arith.addf %2, %4 : vector<8x5xf32>
    %cst_5 = arith.constant 0.000000e+00 : f32
    %6 = vector.broadcast %cst_5 : f32 to vector<8x5xf32>
    %7 = arith.maximumf %5, %6 : vector<8x5xf32>
    %c0_6 = arith.constant 0 : index
    %c0_7 = arith.constant 0 : index
    %8 = vector.load %arg4[%c0_6, %c0_7] : memref<5x5xf32, #tpu.memory_space<vmem>>, vector<5x5xf32>
    %cst_8 = arith.constant dense<0.000000e+00> : vector<8x5xf32>
    %9 = tpu.matmul %7, %8, %cst_8 {dimension_numbers = #tpu.dot_dimension_numbers<[1], [0], [0], [1], [0, 0, 1, 1], [], []>} : vector<8x5xf32>, vector<5x5xf32>, vector<8x5xf32> -> vector<8x5xf32>
    %c0_9 = arith.constant 0 : index
    %c0_10 = arith.constant 0 : index
    %10 = vector.load %arg5[%c0_9, %c0_10] : memref<1x5xf32, #tpu.memory_space<vmem>>, vector<1x5xf32>
    %11 = vector.broadcast %10 : vector<1x5xf32> to vector<8x5xf32>
    %12 = arith.addf %9, %11 : vector<8x5xf32>
    %cst_11 = arith.constant 0.000000e+00 : f32
    %13 = vector.broadcast %cst_11 : f32 to vector<8x5xf32>
    %14 = arith.maximumf %12, %13 : vector<8x5xf32>
    %c0_12 = arith.constant 0 : index
    %c0_13 = arith.constant 0 : index
    %15 = vector.load %arg6[%c0_12, %c0_13] : memref<5x2xf32, #tpu.memory_space<vmem>>, vector<5x2xf32>
    %cst_14 = arith.constant dense<0.000000e+00> : vector<8x2xf32>
    %16 = tpu.matmul %14, %15, %cst_14 {dimension_numbers = #tpu.dot_dimension_numbers<[1], [0], [0], [1], [0, 0, 1, 1], [], []>} : vector<8x5xf32>, vector<5x2xf32>, vector<8x2xf32> -> vector<8x2xf32>
    %c0_15 = arith.constant 0 : index
    %c0_16 = arith.constant 0 : index
    %17 = vector.load %arg7[%c0_15, %c0_16] : memref<1x2xf32, #tpu.memory_space<vmem>>, vector<1x2xf32>
    %18 = vector.broadcast %17 : vector<1x2xf32> to vector<8x2xf32>
    %19 = arith.addf %16, %18 : vector<8x2xf32>
    %c0_17 = arith.constant 0 : index
    %c0_18 = arith.constant 0 : index
    %20 = vector.load %arg8[%c0_17, %c0_18] : memref<3x8xf32, #tpu.memory_space<vmem>>, vector<3x8xf32>
    %cst_19 = arith.constant dense<0.000000e+00> : vector<8x8xf32>
    %21 = tpu.matmul %0, %20, %cst_19 {dimension_numbers = #tpu.dot_dimension_numbers<[1], [0], [0], [1], [0, 0, 1, 1], [], []>} : vector<8x3xf32>, vector<3x8xf32>, vector<8x8xf32> -> vector<8x8xf32>
    %c0_20 = arith.constant 0 : index
    %c0_21 = arith.constant 0 : index
    %22 = vector.load %arg9[%c0_20, %c0_21] : memref<5x8xf32, #tpu.memory_space<vmem>>, vector<5x8xf32>
    %cst_22 = arith.constant dense<0.000000e+00> : vector<8x8xf32>
    %23 = tpu.matmul %14, %22, %cst_22 {dimension_numbers = #tpu.dot_dimension_numbers<[1], [0], [0], [1], [0, 0, 1, 1], [], []>} : vector<8x5xf32>, vector<5x8xf32>, vector<8x8xf32> -> vector<8x8xf32>
    %24 = arith.addf %21, %23 : vector<8x8xf32>
    %c0_23 = arith.constant 0 : index
    %c0_24 = arith.constant 0 : index
    %25 = vector.load %arg10[%c0_23, %c0_24] : memref<1x8xf32, #tpu.memory_space<vmem>>, vector<1x8xf32>
    %26 = vector.broadcast %25 : vector<1x8xf32> to vector<8x8xf32>
    %27 = arith.addf %24, %26 : vector<8x8xf32>
    %cst_25 = arith.constant 0.000000e+00 : f32
    %28 = vector.broadcast %cst_25 : f32 to vector<8x8xf32>
    %29 = arith.maximumf %27, %28 : vector<8x8xf32>
    %c0_26 = arith.constant 0 : index
    %c0_27 = arith.constant 0 : index
    %30 = vector.load %arg11[%c0_26, %c0_27] : memref<8x8xf32, #tpu.memory_space<vmem>>, vector<8x8xf32>
    %cst_28 = arith.constant dense<0.000000e+00> : vector<8x8xf32>
    %31 = tpu.matmul %29, %30, %cst_28 {dimension_numbers = #tpu.dot_dimension_numbers<[1], [0], [0], [1], [0, 0, 1, 1], [], []>} : vector<8x8xf32>, vector<8x8xf32>, vector<8x8xf32> -> vector<8x8xf32>
    %c0_29 = arith.constant 0 : index
    %c0_30 = arith.constant 0 : index
    %32 = vector.load %arg12[%c0_29, %c0_30] : memref<1x8xf32, #tpu.memory_space<vmem>>, vector<1x8xf32>
    %33 = vector.broadcast %32 : vector<1x8xf32> to vector<8x8xf32>
    %34 = arith.addf %31, %33 : vector<8x8xf32>
    %cst_31 = arith.constant 0.000000e+00 : f32
    %35 = vector.broadcast %cst_31 : f32 to vector<8x8xf32>
    %36 = arith.maximumf %34, %35 : vector<8x8xf32>
    %c0_32 = arith.constant 0 : index
    %c0_33 = arith.constant 0 : index
    %37 = vector.load %arg13[%c0_32, %c0_33] : memref<8x6xf32, #tpu.memory_space<vmem>>, vector<8x6xf32>
    %cst_34 = arith.constant dense<0.000000e+00> : vector<8x6xf32>
    %38 = tpu.matmul %36, %37, %cst_34 {dimension_numbers = #tpu.dot_dimension_numbers<[1], [0], [0], [1], [0, 0, 1, 1], [], []>} : vector<8x8xf32>, vector<8x6xf32>, vector<8x6xf32> -> vector<8x6xf32>
    %c0_35 = arith.constant 0 : index
    %c0_36 = arith.constant 0 : index
    %39 = vector.load %arg14[%c0_35, %c0_36] : memref<1x6xf32, #tpu.memory_space<vmem>>, vector<1x6xf32>
    %40 = vector.broadcast %39 : vector<1x6xf32> to vector<8x6xf32>
    %41 = arith.addf %38, %40 : vector<8x6xf32>
    %c0_37 = arith.constant 0 : index
    %c0_38 = arith.constant 0 : index
    %42 = vector.load %arg15[%c0_37, %c0_38] : memref<6x2xf32, #tpu.memory_space<vmem>>, vector<6x2xf32>
    %cst_39 = arith.constant dense<0.000000e+00> : vector<8x2xf32>
    %43 = tpu.matmul %41, %42, %cst_39 {dimension_numbers = #tpu.dot_dimension_numbers<[1], [0], [0], [1], [0, 0, 1, 1], [], []>} : vector<8x6xf32>, vector<6x2xf32>, vector<8x2xf32> -> vector<8x2xf32>
    %c0_40 = arith.constant 0 : index
    %c0_41 = arith.constant 0 : index
    %44 = vector.load %arg16[%c0_40, %c0_41] : memref<3x6xf32, #tpu.memory_space<vmem>>, vector<3x6xf32>
    %cst_42 = arith.constant dense<0.000000e+00> : vector<8x6xf32>
    %45 = tpu.matmul %0, %44, %cst_42 {dimension_numbers = #tpu.dot_dimension_numbers<[1], [0], [0], [1], [0, 0, 1, 1], [], []>} : vector<8x3xf32>, vector<3x6xf32>, vector<8x6xf32> -> vector<8x6xf32>
    %c0_43 = arith.constant 0 : index
    %c0_44 = arith.constant 0 : index
    %46 = vector.load %arg17[%c0_43, %c0_44] : memref<5x6xf32, #tpu.memory_space<vmem>>, vector<5x6xf32>
    %cst_45 = arith.constant dense<0.000000e+00> : vector<8x6xf32>
    %47 = tpu.matmul %14, %46, %cst_45 {dimension_numbers = #tpu.dot_dimension_numbers<[1], [0], [0], [1], [0, 0, 1, 1], [], []>} : vector<8x5xf32>, vector<5x6xf32>, vector<8x6xf32> -> vector<8x6xf32>
    %48 = arith.addf %45, %47 : vector<8x6xf32>
    %c0_46 = arith.constant 0 : index
    %c0_47 = arith.constant 0 : index
    %49 = vector.load %arg18[%c0_46, %c0_47] : memref<1x6xf32, #tpu.memory_space<vmem>>, vector<1x6xf32>
    %50 = vector.broadcast %49 : vector<1x6xf32> to vector<8x6xf32>
    %51 = arith.addf %48, %50 : vector<8x6xf32>
    %cst_48 = arith.constant 0.000000e+00 : f32
    %52 = vector.broadcast %cst_48 : f32 to vector<8x6xf32>
    %53 = arith.maximumf %51, %52 : vector<8x6xf32>
    %c0_49 = arith.constant 0 : index
    %c0_50 = arith.constant 0 : index
    %54 = vector.load %arg19[%c0_49, %c0_50] : memref<6x6xf32, #tpu.memory_space<vmem>>, vector<6x6xf32>
    %cst_51 = arith.constant dense<0.000000e+00> : vector<8x6xf32>
    %55 = tpu.matmul %53, %54, %cst_51 {dimension_numbers = #tpu.dot_dimension_numbers<[1], [0], [0], [1], [0, 0, 1, 1], [], []>} : vector<8x6xf32>, vector<6x6xf32>, vector<8x6xf32> -> vector<8x6xf32>
    %c0_52 = arith.constant 0 : index
    %c0_53 = arith.constant 0 : index
    %56 = vector.load %arg20[%c0_52, %c0_53] : memref<1x6xf32, #tpu.memory_space<vmem>>, vector<1x6xf32>
    %57 = vector.broadcast %56 : vector<1x6xf32> to vector<8x6xf32>
    %58 = arith.addf %55, %57 : vector<8x6xf32>
    %cst_54 = arith.constant 0.000000e+00 : f32
    %59 = vector.broadcast %cst_54 : f32 to vector<8x6xf32>
    %60 = arith.maximumf %58, %59 : vector<8x6xf32>
    %c0_55 = arith.constant 0 : index
    %c0_56 = arith.constant 0 : index
    %61 = vector.load %arg21[%c0_55, %c0_56] : memref<6x2xf32, #tpu.memory_space<vmem>>, vector<6x2xf32>
    %cst_57 = arith.constant dense<0.000000e+00> : vector<8x2xf32>
    %62 = tpu.matmul %60, %61, %cst_57 {dimension_numbers = #tpu.dot_dimension_numbers<[1], [0], [0], [1], [0, 0, 1, 1], [], []>} : vector<8x6xf32>, vector<6x2xf32>, vector<8x2xf32> -> vector<8x2xf32>
    %c0_58 = arith.constant 0 : index
    %c0_59 = arith.constant 0 : index
    %63 = vector.load %arg22[%c0_58, %c0_59] : memref<1x2xf32, #tpu.memory_space<vmem>>, vector<1x2xf32>
    %64 = vector.broadcast %63 : vector<1x2xf32> to vector<8x2xf32>
    %65 = arith.addf %62, %64 : vector<8x2xf32>
    %66 = arith.addf %19, %43 : vector<8x2xf32>
    %cst_60 = arith.constant 1.000000e-01 : f32
    %67 = vector.broadcast %cst_60 : f32 to vector<8x2xf32>
    %68 = arith.mulf %67, %65 : vector<8x2xf32>
    %69 = arith.addf %66, %68 : vector<8x2xf32>
    %c0_61 = arith.constant 0 : index
    %c0_62 = arith.constant 0 : index
    %70 = vector.load %arg23[%c0_61, %c0_62] : memref<8x2xf32, #tpu.memory_space<vmem>>, vector<8x2xf32>
    tpu.vector_store %arg23[%c0_61, %c0_62], %69 {strides = array<i32>} : memref<8x2xf32, #tpu.memory_space<vmem>>, vector<8x2xf32>,
    return
  }
  func.func @transform_0(%arg0: i32) -> (i32, i32) {
    %c0_i32 = arith.constant 0 : i32
    %c0_i32_0 = arith.constant 0 : i32
    return %arg0, %c0_i32 : i32, i32
  }
  func.func @transform_1(%arg0: i32) -> (i32, i32) {
    %c0_i32 = arith.constant 0 : i32
    %c0_i32_0 = arith.constant 0 : i32
    %c0_i32_1 = arith.constant 0 : i32
    return %c0_i32, %c0_i32_0 : i32, i32
  }
  func.func @transform_2(%arg0: i32) -> (i32, i32) {
    %c0_i32 = arith.constant 0 : i32
    %c0_i32_0 = arith.constant 0 : i32
    %c0_i32_1 = arith.constant 0 : i32
    return %c0_i32, %c0_i32_0 : i32, i32
  }
  func.func @transform_3(%arg0: i32) -> (i32, i32) {
    %c0_i32 = arith.constant 0 : i32
    %c0_i32_0 = arith.constant 0 : i32
    %c0_i32_1 = arith.constant 0 : i32
    return %c0_i32, %c0_i32_0 : i32, i32
  }
  func.func @transform_4(%arg0: i32) -> (i32, i32) {
    %c0_i32 = arith.constant 0 : i32
    %c0_i32_0 = arith.constant 0 : i32
    %c0_i32_1 = arith.constant 0 : i32
    return %c0_i32, %c0_i32_0 : i32, i32
  }
  func.func @transform_5(%arg0: i32) -> (i32, i32) {
    %c0_i32 = arith.constant 0 : i32
    %c0_i32_0 = arith.constant 0 : i32
    %c0_i32_1 = arith.constant 0 : i32
    return %c0_i32, %c0_i32_0 : i32, i32
  }
  func.func @transform_6(%arg0: i32) -> (i32, i32) {
    %c0_i32 = arith.constant 0 : i32
    %c0_i32_0 = arith.constant 0 : i32
    %c0_i32_1 = arith.constant 0 : i32
    return %c0_i32, %c0_i32_0 : i32, i32
  }
  func.func @transform_7(%arg0: i32) -> (i32, i32) {
    %c0_i32 = arith.constant 0 : i32
    %c0_i32_0 = arith.constant 0 : i32
    %c0_i32_1 = arith.constant 0 : i32
    return %c0_i32, %c0_i32_0 : i32, i32
  }
  func.func @transform_8(%arg0: i32) -> (i32, i32) {
    %c0_i32 = arith.constant 0 : i32
    %c0_i32_0 = arith.constant 0 : i32
    %c0_i32_1 = arith.constant 0 : i32
    return %c0_i32, %c0_i32_0 : i32, i32
  }
  func.func @transform_9(%arg0: i32) -> (i32, i32) {
    %c0_i32 = arith.constant 0 : i32
    %c0_i32_0 = arith.constant 0 : i32
    %c0_i32_1 = arith.constant 0 : i32
    return %c0_i32, %c0_i32_0 : i32, i32
  }
  func.func @transform_10(%arg0: i32) -> (i32, i32) {
    %c0_i32 = arith.constant 0 : i32
    %c0_i32_0 = arith.constant 0 : i32
    %c0_i32_1 = arith.constant 0 : i32
    return %c0_i32, %c0_i32_0 : i32, i32
  }
  func.func @transform_11(%arg0: i32) -> (i32, i32) {
    %c0_i32 = arith.constant 0 : i32
    %c0_i32_0 = arith.constant 0 : i32
    %c0_i32_1 = arith.constant 0 : i32
    return %c0_i32, %c0_i32_0 : i32, i32
  }
  func.func @transform_12(%arg0: i32) -> (i32, i32) {
    %c0_i32 = arith.constant 0 : i32
    %c0_i32_0 = arith.constant 0 : i32
    %c0_i32_1 = arith.constant 0 : i32
    return %c0_i32, %c0_i32_0 : i32, i32
  }
  func.func @transform_13(%arg0: i32) -> (i32, i32) {
    %c0_i32 = arith.constant 0 : i32
    %c0_i32_0 = arith.constant 0 : i32
    %c0_i32_1 = arith.constant 0 : i32
    return %c0_i32, %c0_i32_0 : i32, i32
  }
  func.func @transform_14(%arg0: i32) -> (i32, i32) {
    %c0_i32 = arith.constant 0 : i32
    %c0_i32_0 = arith.constant 0 : i32
    %c0_i32_1 = arith.constant 0 : i32
    return %c0_i32, %c0_i32_0 : i32, i32
  }
  func.func @transform_15(%arg0: i32) -> (i32, i32) {
    %c0_i32 = arith.constant 0 : i32
    %c0_i32_0 = arith.constant 0 : i32
    %c0_i32_1 = arith.constant 0 : i32
    return %c0_i32, %c0_i32_0 : i32, i32
  }
  func.func @transform_16(%arg0: i32) -> (i32, i32) {
    %c0_i32 = arith.constant 0 : i32
    %c0_i32_0 = arith.constant 0 : i32
    %c0_i32_1 = arith.constant 0 : i32
    return %c0_i32, %c0_i32_0 : i32, i32
  }
  func.func @transform_17(%arg0: i32) -> (i32, i32) {
    %c0_i32 = arith.constant 0 : i32
    %c0_i32_0 = arith.constant 0 : i32
    %c0_i32_1 = arith.constant 0 : i32
    return %c0_i32, %c0_i32_0 : i32, i32
  }
  func.func @transform_18(%arg0: i32) -> (i32, i32) {
    %c0_i32 = arith.constant 0 : i32
    %c0_i32_0 = arith.constant 0 : i32
    %c0_i32_1 = arith.constant 0 : i32
    return %c0_i32, %c0_i32_0 : i32, i32
  }
  func.func @transform_19(%arg0: i32) -> (i32, i32) {
    %c0_i32 = arith.constant 0 : i32
    %c0_i32_0 = arith.constant 0 : i32
    %c0_i32_1 = arith.constant 0 : i32
    return %c0_i32, %c0_i32_0 : i32, i32
  }
  func.func @transform_20(%arg0: i32) -> (i32, i32) {
    %c0_i32 = arith.constant 0 : i32
    %c0_i32_0 = arith.constant 0 : i32
    %c0_i32_1 = arith.constant 0 : i32
    return %c0_i32, %c0_i32_0 : i32, i32
  }
  func.func @transform_21(%arg0: i32) -> (i32, i32) {
    %c0_i32 = arith.constant 0 : i32
    %c0_i32_0 = arith.constant 0 : i32
    %c0_i32_1 = arith.constant 0 : i32
    return %c0_i32, %c0_i32_0 : i32, i32
  }
  func.func @transform_22(%arg0: i32) -> (i32, i32) {
    %c0_i32 = arith.constant 0 : i32
    %c0_i32_0 = arith.constant 0 : i32
    return %arg0, %c0_i32 : i32, i32
  }
}

</mosaic_0001>

<llo_original>
// kernel: tpu_custom_call.1
$region0: #{tpu_custom_call.1}
  #allocation0 [shape = 'u32[]', space=smem, size = 0x4, offset = 0x4, fixed_abs, tag = 'smem constant byte address 0x4 - core index']
  #allocation1 [shape = 'u32[144,128]{1,0:T(1,128)}', space=vmem, size = 0x12000, scoped, tag = 'internal scratch']
  %s0 = inlined_call_operand.vmem [shape: f32[8,3], index: 0, kind: input, shape index: {}]
  %s1 = inlined_call_operand.hbm [shape: f32[3,5], index: 1, kind: input, shape index: {}]
  %s2 = inlined_call_operand.hbm [shape: f32[1,5], index: 2, kind: input, shape index: {}]
  %s3 = inlined_call_operand.vmem [shape: f32[5,5], index: 3, kind: input, shape index: {}]
  %s4 = inlined_call_operand.hbm [shape: f32[1,5], index: 4, kind: input, shape index: {}]
  %s5 = inlined_call_operand.vmem [shape: f32[5,2], index: 5, kind: input, shape index: {}]
  %s6 = inlined_call_operand.hbm [shape: f32[1,2], index: 6, kind: input, shape index: {}]
  %s7 = inlined_call_operand.vmem [shape: f32[3,8], index: 7, kind: input, shape index: {}]
  %s8 = inlined_call_operand.vmem [shape: f32[5,8], index: 8, kind: input, shape index: {}]
  %s9 = inlined_call_operand.hbm [shape: f32[1,8], index: 9, kind: input, shape index: {}]
  %s10 = inlined_call_operand.vmem [shape: f32[8,8], index: 10, kind: input, shape index: {}]
  %s11 = inlined_call_operand.vmem [shape: f32[1,8], index: 11, kind: input, shape index: {}]
  %s12 = inlined_call_operand.vmem [shape: f32[8,6], index: 12, kind: input, shape index: {}]
  %s13 = inlined_call_operand.vmem [shape: f32[1,6], index: 13, kind: input, shape index: {}]
  %s14 = inlined_call_operand.vmem [shape: f32[6,2], index: 14, kind: input, shape index: {}]
  %s15 = inlined_call_operand.vmem [shape: f32[3,6], index: 15, kind: input, shape index: {}]
  %s16 = inlined_call_operand.vmem [shape: f32[5,6], index: 16, kind: input, shape index: {}]
  %s17 = inlined_call_operand.vmem [shape: f32[1,6], index: 17, kind: input, shape index: {}]
  %s18 = inlined_call_operand.vmem [shape: f32[6,6], index: 18, kind: input, shape index: {}]
  %s19 = inlined_call_operand.vmem [shape: f32[1,6], index: 19, kind: input, shape index: {}]
  %s20 = inlined_call_operand.vmem [shape: f32[6,2], index: 20, kind: input, shape index: {}]
  %s21 = inlined_call_operand.vmem [shape: f32[1,2], index: 21, kind: input, shape index: {}]
  %s22 = inlined_call_operand.vmem [shape: f32[8,2], index: 22, kind: output, shape index: {}]
  %s23 = sld [smem:[#allocation0]]
  $region118: #{tpu_custom_call.1} parent=0
    _
  %s25 = ssub.s32 1, %s23
  %s26 = scalar_select 0, %s25, %s23
  $region1: #{tpu_custom_call.1} parent=0
    #allocation2 [shape = 'u8[2048]{0}', space=vmem, size = 0x800, scoped, tag = 'input window, operand 1, single buffered']
    #allocation3 [shape = 's32[1]{0}', space=sflag, size = 0x4, scoped, tag = 'scoped memory for tpu_custom_call.1']
    #allocation4 [shape = 'u8[512]{0}', space=vmem, size = 0x400, scoped, tag = 'input window, operand 2, single buffered']
    #allocation5 [shape = 's32[1]{0}', space=sflag, size = 0x4, scoped, tag = 'scoped memory for tpu_custom_call.1']
    #allocation6 [shape = 'u8[512]{0}', space=vmem, size = 0x400, scoped, tag = 'input window, operand 4, single buffered']
    #allocation7 [shape = 'u8[512]{0}', space=vmem, size = 0x400, scoped, tag = 'input window, operand 6, single buffered']
    #allocation8 [shape = 's32[1]{0}', space=sflag, size = 0x4, scoped, tag = 'scoped memory for tpu_custom_call.1']
    #allocation9 [shape = 'u8[512]{0}', space=vmem, size = 0x400, scoped, tag = 'input window, operand 9, single buffered']
    %27 = vsyncpa [#allocation3], 0
    %28 = vsyncpa [#allocation5], 0
    %29 = vsyncpa [#allocation8], 0
    // Predicated region
    $region2: #{tpu_custom_call.1} parent=1 // pred_check
      _
    $region3: #{tpu_custom_call.1} parent=1 // pred_check_branch
      %31 = sbr.rel (0) target = $region5
    $region4: #{tpu_custom_call.1} parent=1 // pred_region
      _
    $region5: #{tpu_custom_call.1} parent=1 // pred_fallthru
      _
    // Predicated region
    $region6: #{tpu_custom_call.1} parent=1 // pred_check
      _
    $region7: #{tpu_custom_call.1} parent=1 // pred_check_branch
      %33 = sbr.rel (0) target = $region9
    $region8: #{tpu_custom_call.1} parent=1 // pred_region
      %s35 = ssub.s32 64, 64
      %36 = vsyncadd [#allocation3], %s35
      %s38 = sshll.u32 [#allocation2], 4
      %s39 = int_to_ptr.vmem [resolvable:$true] %s38
      %41 = dma.hbm_to_vmem [thread:$0]  %s1, 64, %s39, [#allocation3]
    $region9: #{tpu_custom_call.1} parent=1 // pred_fallthru
      _
    // Predicated region
    $region10: #{tpu_custom_call.1} parent=1 // pred_check
      _
    $region11: #{tpu_custom_call.1} parent=1 // pred_check_branch
      %43 = sbr.rel (0) target = $region13
    $region12: #{tpu_custom_call.1} parent=1 // pred_region
      %s45 = ssub.s32 16, 16
      %46 = vsyncadd [#allocation5], %s45
      %s48 = sshll.u32 [#allocation4], 4
      %s49 = int_to_ptr.vmem [resolvable:$true] %s48
      %51 = dma.hbm_to_vmem [thread:$0]  %s2, 16, %s49, [#allocation5]
    $region13: #{tpu_custom_call.1} parent=1 // pred_fallthru
      _
    // Predicated region
    $region14: #{tpu_custom_call.1} parent=1 // pred_check
      _
    $region15: #{tpu_custom_call.1} parent=1 // pred_check_branch
      %53 = sbr.rel (0) target = $region17
    $region16: #{tpu_custom_call.1} parent=1 // pred_region
      _
    $region17: #{tpu_custom_call.1} parent=1 // pred_fallthru
      _
    // Predicated region
    $region18: #{tpu_custom_call.1} parent=1 // pred_check
      _
    $region19: #{tpu_custom_call.1} parent=1 // pred_check_branch
      %55 = sbr.rel (0) target = $region21
    $region20: #{tpu_custom_call.1} parent=1 // pred_region
      %s57 = ssub.s32 16, 16
      %58 = vsyncadd [#allocation5], %s57
      %s60 = sshll.u32 [#allocation6], 4
      %s61 = int_to_ptr.vmem [resolvable:$true] %s60
      %63 = dma.hbm_to_vmem [thread:$0]  %s4, 16, %s61, [#allocation5]
    $region21: #{tpu_custom_call.1} parent=1 // pred_fallthru
      _
    // Predicated region
    $region22: #{tpu_custom_call.1} parent=1 // pred_check
      _
    $region23: #{tpu_custom_call.1} parent=1 // pred_check_branch
      %65 = sbr.rel (0) target = $region25
    $region24: #{tpu_custom_call.1} parent=1 // pred_region
      _
    $region25: #{tpu_custom_call.1} parent=1 // pred_fallthru
      _
    // Predicated region
    $region26: #{tpu_custom_call.1} parent=1 // pred_check
      _
    $region27: #{tpu_custom_call.1} parent=1 // pred_check_branch
      %67 = sbr.rel (0) target = $region29
    $region28: #{tpu_custom_call.1} parent=1 // pred_region
      %s69 = ssub.s32 16, 16
      %70 = vsyncadd [#allocation8], %s69
      %s72 = sshll.u32 [#allocation7], 4
      %s73 = int_to_ptr.vmem [resolvable:$true] %s72
      %75 = dma.hbm_to_vmem [thread:$0]  %s6, 16, %s73, [#allocation8]
    $region29: #{tpu_custom_call.1} parent=1 // pred_fallthru
      _
    // Predicated region
    $region30: #{tpu_custom_call.1} parent=1 // pred_check
      _
    $region31: #{tpu_custom_call.1} parent=1 // pred_check_branch
      %77 = sbr.rel (0) target = $region33
    $region32: #{tpu_custom_call.1} parent=1 // pred_region
      _
    $region33: #{tpu_custom_call.1} parent=1 // pred_fallthru
      _
    // Predicated region
    $region34: #{tpu_custom_call.1} parent=1 // pred_check
      _
    $region35: #{tpu_custom_call.1} parent=1 // pred_check_branch
      %79 = sbr.rel (0) target = $region37
    $region36: #{tpu_custom_call.1} parent=1 // pred_region
      _
    $region37: #{tpu_custom_call.1} parent=1 // pred_fallthru
      _
    // Predicated region
    $region38: #{tpu_custom_call.1} parent=1 // pred_check
      _
    $region39: #{tpu_custom_call.1} parent=1 // pred_check_branch
      %81 = sbr.rel (0) target = $region41
    $region40: #{tpu_custom_call.1} parent=1 // pred_region
      %s83 = ssub.s32 16, 16
      %84 = vsyncadd [#allocation8], %s83
      %s86 = sshll.u32 [#allocation9], 4
      %s87 = int_to_ptr.vmem [resolvable:$true] %s86
      %89 = dma.hbm_to_vmem [thread:$0]  %s9, 16, %s87, [#allocation8]
    $region41: #{tpu_custom_call.1} parent=1 // pred_fallthru
      _
    // Predicated region
    $region42: #{tpu_custom_call.1} parent=1 // pred_check
      _
    $region43: #{tpu_custom_call.1} parent=1 // pred_check_branch
      %91 = sbr.rel (0) target = $region45
    $region44: #{tpu_custom_call.1} parent=1 // pred_region
      _
    $region45: #{tpu_custom_call.1} parent=1 // pred_fallthru
      _
    // Predicated region
    $region46: #{tpu_custom_call.1} parent=1 // pred_check
      _
    $region47: #{tpu_custom_call.1} parent=1 // pred_check_branch
      %93 = sbr.rel (0) target = $region49
    $region48: #{tpu_custom_call.1} parent=1 // pred_region
      _
    $region49: #{tpu_custom_call.1} parent=1 // pred_fallthru
      _
    // Predicated region
    $region50: #{tpu_custom_call.1} parent=1 // pred_check
      _
    $region51: #{tpu_custom_call.1} parent=1 // pred_check_branch
      %95 = sbr.rel (0) target = $region53
    $region52: #{tpu_custom_call.1} parent=1 // pred_region
      _
    $region53: #{tpu_custom_call.1} parent=1 // pred_fallthru
      _
    // Predicated region
    $region54: #{tpu_custom_call.1} parent=1 // pred_check
      _
    $region55: #{tpu_custom_call.1} parent=1 // pred_check_branch
      %97 = sbr.rel (0) target = $region57
    $region56: #{tpu_custom_call.1} parent=1 // pred_region
      _
    $region57: #{tpu_custom_call.1} parent=1 // pred_fallthru
      _
    // Predicated region
    $region58: #{tpu_custom_call.1} parent=1 // pred_check
      _
    $region59: #{tpu_custom_call.1} parent=1 // pred_check_branch
      %99 = sbr.rel (0) target = $region61
    $region60: #{tpu_custom_call.1} parent=1 // pred_region
      _
    $region61: #{tpu_custom_call.1} parent=1 // pred_fallthru
      _
    // Predicated region
    $region62: #{tpu_custom_call.1} parent=1 // pred_check
      _
    $region63: #{tpu_custom_call.1} parent=1 // pred_check_branch
      %101 = sbr.rel (0) target = $region65
    $region64: #{tpu_custom_call.1} parent=1 // pred_region
      _
    $region65: #{tpu_custom_call.1} parent=1 // pred_fallthru
      _
    // Predicated region
    $region66: #{tpu_custom_call.1} parent=1 // pred_check
      _
    $region67: #{tpu_custom_call.1} parent=1 // pred_check_branch
      %103 = sbr.rel (0) target = $region69
    $region68: #{tpu_custom_call.1} parent=1 // pred_region
      _
    $region69: #{tpu_custom_call.1} parent=1 // pred_fallthru
      _
    // Predicated region
    $region70: #{tpu_custom_call.1} parent=1 // pred_check
      _
    $region71: #{tpu_custom_call.1} parent=1 // pred_check_branch
      %105 = sbr.rel (0) target = $region73
    $region72: #{tpu_custom_call.1} parent=1 // pred_region
      _
    $region73: #{tpu_custom_call.1} parent=1 // pred_fallthru
      _
    // Predicated region
    $region74: #{tpu_custom_call.1} parent=1 // pred_check
      _
    $region75: #{tpu_custom_call.1} parent=1 // pred_check_branch
      %107 = sbr.rel (0) target = $region77
    $region76: #{tpu_custom_call.1} parent=1 // pred_region
      _
    $region77: #{tpu_custom_call.1} parent=1 // pred_fallthru
      _
    // Predicated region
    $region78: #{tpu_custom_call.1} parent=1 // pred_check
      _
    $region79: #{tpu_custom_call.1} parent=1 // pred_check_branch
      %109 = sbr.rel (0) target = $region81
    $region80: #{tpu_custom_call.1} parent=1 // pred_region
      _
    $region81: #{tpu_custom_call.1} parent=1 // pred_fallthru
      _
    // Predicated region
    $region82: #{tpu_custom_call.1} parent=1 // pred_check
      _
    $region83: #{tpu_custom_call.1} parent=1 // pred_check_branch
      %111 = sbr.rel (0) target = $region85
    $region84: #{tpu_custom_call.1} parent=1 // pred_region
      _
    $region85: #{tpu_custom_call.1} parent=1 // pred_fallthru
      _
    // Predicated region
    $region86: #{tpu_custom_call.1} parent=1 // pred_check
      _
    $region87: #{tpu_custom_call.1} parent=1 // pred_check_branch
      %113 = sbr.rel (0) target = $region89
    $region88: #{tpu_custom_call.1} parent=1 // pred_region
      _
    $region89: #{tpu_custom_call.1} parent=1 // pred_fallthru
      _
    // Predicated region
    $region90: #{tpu_custom_call.1} parent=1 // pred_check
      _
    $region91: #{tpu_custom_call.1} parent=1 // pred_check_branch
      %115 = sbr.rel (0) target = $region93
    $region92: #{tpu_custom_call.1} parent=1 // pred_region
      %116 = dma.done [#allocation3], 64
    $region93: #{tpu_custom_call.1} parent=1 // pred_fallthru
      _
    // Predicated region
    $region94: #{tpu_custom_call.1} parent=1 // pred_check
      _
    $region95: #{tpu_custom_call.1} parent=1 // pred_check_branch
      %118 = sbr.rel (0) target = $region97
    $region96: #{tpu_custom_call.1} parent=1 // pred_region
      %119 = dma.done [#allocation5], 16
    $region97: #{tpu_custom_call.1} parent=1 // pred_fallthru
      _
    // Predicated region
    $region98: #{tpu_custom_call.1} parent=1 // pred_check
      _
    $region99: #{tpu_custom_call.1} parent=1 // pred_check_branch
      %121 = sbr.rel (0) target = $region101
    $region100: #{tpu_custom_call.1} parent=1 // pred_region
      %122 = dma.done [#allocation5], 16
    $region101: #{tpu_custom_call.1} parent=1 // pred_fallthru
      _
    // Predicated region
    $region102: #{tpu_custom_call.1} parent=1 // pred_check
      _
    $region103: #{tpu_custom_call.1} parent=1 // pred_check_branch
      %124 = sbr.rel (0) target = $region105
    $region104: #{tpu_custom_call.1} parent=1 // pred_region
      %125 = dma.done [#allocation8], 16
    $region105: #{tpu_custom_call.1} parent=1 // pred_fallthru
      _
    // Predicated region
    $region106: #{tpu_custom_call.1} parent=1 // pred_check
      _
    $region107: #{tpu_custom_call.1} parent=1 // pred_check_branch
      %127 = sbr.rel (0) target = $region109
    $region108: #{tpu_custom_call.1} parent=1 // pred_region
      %128 = dma.done [#allocation8], 16
    $region109: #{tpu_custom_call.1} parent=1 // pred_fallthru
      _
    %v129 = vld [vmem:[%s0] sm:$0xff]
    %v130 = vld [vmem:[#allocation2] sm:$0x7]
    %v131 = vld [vmem:[#allocation4] sm:$0x1]
    %v133 = vlaneseq
    %v134 = vshrl.u32 %v133, 7
    %v135 = vsub.s32 0, %v134
    %v136 = vrot.slane %v131, %v135
    %vm138 = vcmask 23552
    %v140 = vsel %vm138, %v129, 0
    %vm142 = vcmask 1042432
    %v144 = vsel %vm142, %v130, 0
    %146 = vmatprep.subr.mxu0 0.0
    %147 = vmatpush1.msra.mxu0 0.0
    %148 = vmatprep.subr.mxu0 0.0
    %149 = vmatpush1.msra.mxu0 0.0
    %150 = vmatprep.subr.mxu0 0.0
    %151 = vmatpush1.msra.mxu0 0.0
    %152 = vmatprep.subr.mxu0 0.0
    %153 = vmatpush1.msra.mxu0 0.0
    %154 = vmatprep.subr.mxu0 0.0
    %155 = vmatpush1.msra.mxu0 0.0
    %156 = vmatprep.subr.mxu0 0.0
    %157 = vmatpush1.msra.mxu0 0.0
    %158 = vmatprep.subr.mxu0 0.0
    %159 = vmatpush1.msra.mxu0 0.0
    %160 = vmatprep.subr.mxu0 0.0
    %161 = vmatpush1.msra.mxu0 0.0
    %162 = vmatprep.subr.mxu0 0.0
    %163 = vmatpush1.msra.mxu0 0.0
    %164 = vmatprep.subr.mxu0 0.0
    %165 = vmatpush1.msra.mxu0 0.0
    %166 = vmatprep.subr.mxu0 0.0
    %167 = vmatpush1.msra.mxu0 0.0
    %168 = vmatprep.subr.mxu0 0.0
    %169 = vmatpush1.msra.mxu0 0.0
    %170 = vmatprep.subr.mxu0 0.0
    %171 = vmatpush1.msra.mxu0 0.0
    %172 = vmatprep.subr.mxu0 0.0
    %173 = vmatpush1.msra.mxu0 0.0
    %174 = vmatprep.subr.mxu0 0.0
    %175 = vmatpush1.msra.mxu0 0.0
    %176 = vmatprep.subr.mxu0 0.0
    %177 = vmatpush1.msra.mxu0 %v144
    %178 = vmatprep.subr.mxu0 0.0
    %179 = vmatpush2.msra.mxu0 0.0
    %180 = vmatprep.subr.mxu0 0.0
    %181 = vmatpush2.msra.mxu0 0.0
    %182 = vmatprep.subr.mxu0 0.0
    %183 = vmatpush2.msra.mxu0 0.0
    %184 = vmatprep.subr.mxu0 0.0
    %185 = vmatpush2.msra.mxu0 0.0
    %186 = vmatprep.subr.mxu0 0.0
    %187 = vmatpush2.msra.mxu0 0.0
    %188 = vmatprep.subr.mxu0 0.0
    %189 = vmatpush2.msra.mxu0 0.0
    %190 = vmatprep.subr.mxu0 0.0
    %191 = vmatpush2.msra.mxu0 0.0
    %192 = vmatprep.subr.mxu0 0.0
    %193 = vmatpush2.msra.mxu0 0.0
    %194 = vmatprep.subr.mxu0 0.0
    %195 = vmatpush2.msra.mxu0 0.0
    %196 = vmatprep.subr.mxu0 0.0
    %197 = vmatpush2.msra.mxu0 0.0
    %198 = vmatprep.subr.mxu0 0.0
    %199 = vmatpush2.msra.mxu0 0.0
    %200 = vmatprep.subr.mxu0 0.0
    %201 = vmatpush2.msra.mxu0 0.0
    %202 = vmatprep.subr.mxu0 0.0
    %203 = vmatpush2.msra.mxu0 0.0
    %204 = vmatprep.subr.mxu0 0.0
    %205 = vmatpush2.msra.mxu0 0.0
    %206 = vmatprep.subr.mxu0 0.0
    %207 = vmatpush2.msra.mxu0 0.0
    %208 = vmatprep.subr.mxu0 0.0
    %209 = vmatpush2.msra.mxu0 0.0
    %210 = vmatprep.mubr.f32.mxu0 0.0
    %211 = vmatmul.mubr.f32.gmra.mxu0 %v140
    %v212 = vpop.f32.mrf.mxu0
    %v213 = vadd.f32 %v136, %v212
    %v214 = vpop.f32.mrf.mxu0
    %215 = vdwg.mxu0
    %v216 = vmax.f32 %v213, 0.0
    %v217 = vld [vmem:[%s3] sm:$0x1f]
    %v218 = vld [vmem:[#allocation6] sm:$0x1]
    %v220 = vlaneseq
    %v221 = vshrl.u32 %v220, 7
    %v222 = vsub.s32 0, %v221
    %v223 = vrot.slane %v218, %v222
    %vm225 = vcmask 39936
    %v227 = vsel %vm225, %v216, 0
    %vm229 = vcmask 1044480
    %v231 = vsel %vm229, %v217, 0
    %233 = vmatprep.subr.mxu0 0.0
    %234 = vmatpush1.msra.mxu0 0.0
    %235 = vmatprep.subr.mxu0 0.0
    %236 = vmatpush1.msra.mxu0 0.0
    %237 = vmatprep.subr.mxu0 0.0
    %238 = vmatpush1.msra.mxu0 0.0
    %239 = vmatprep.subr.mxu0 0.0
    %240 = vmatpush1.msra.mxu0 0.0
    %241 = vmatprep.subr.mxu0 0.0
    %242 = vmatpush1.msra.mxu0 0.0
    %243 = vmatprep.subr.mxu0 0.0
    %244 = vmatpush1.msra.mxu0 0.0
    %245 = vmatprep.subr.mxu0 0.0
    %246 = vmatpush1.msra.mxu0 0.0
    %247 = vmatprep.subr.mxu0 0.0
    %248 = vmatpush1.msra.mxu0 0.0
    %249 = vmatprep.subr.mxu0 0.0
    %250 = vmatpush1.msra.mxu0 0.0
    %251 = vmatprep.subr.mxu0 0.0
    %252 = vmatpush1.msra.mxu0 0.0
    %253 = vmatprep.subr.mxu0 0.0
    %254 = vmatpush1.msra.mxu0 0.0
    %255 = vmatprep.subr.mxu0 0.0
    %256 = vmatpush1.msra.mxu0 0.0
    %257 = vmatprep.subr.mxu0 0.0
    %258 = vmatpush1.msra.mxu0 0.0
    %259 = vmatprep.subr.mxu0 0.0
    %260 = vmatpush1.msra.mxu0 0.0
    %261 = vmatprep.subr.mxu0 0.0
    %262 = vmatpush1.msra.mxu0 0.0
    %263 = vmatprep.subr.mxu0 0.0
    %264 = vmatpush1.msra.mxu0 %v231
    %265 = vmatprep.subr.mxu0 0.0
    %266 = vmatpush2.msra.mxu0 0.0
    %267 = vmatprep.subr.mxu0 0.0
    %268 = vmatpush2.msra.mxu0 0.0
    %269 = vmatprep.subr.mxu0 0.0
    %270 = vmatpush2.msra.mxu0 0.0
    %271 = vmatprep.subr.mxu0 0.0
    %272 = vmatpush2.msra.mxu0 0.0
    %273 = vmatprep.subr.mxu0 0.0
    %274 = vmatpush2.msra.mxu0 0.0
    %275 = vmatprep.subr.mxu0 0.0
    %276 = vmatpush2.msra.mxu0 0.0
    %277 = vmatprep.subr.mxu0 0.0
    %278 = vmatpush2.msra.mxu0 0.0
    %279 = vmatprep.subr.mxu0 0.0
    %280 = vmatpush2.msra.mxu0 0.0
    %281 = vmatprep.subr.mxu0 0.0
    %282 = vmatpush2.msra.mxu0 0.0
    %283 = vmatprep.subr.mxu0 0.0
    %284 = vmatpush2.msra.mxu0 0.0
    %285 = vmatprep.subr.mxu0 0.0
    %286 = vmatpush2.msra.mxu0 0.0
    %287 = vmatprep.subr.mxu0 0.0
    %288 = vmatpush2.msra.mxu0 0.0
    %289 = vmatprep.subr.mxu0 0.0
    %290 = vmatpush2.msra.mxu0 0.0
    %291 = vmatprep.subr.mxu0 0.0
    %292 = vmatpush2.msra.mxu0 0.0
    %293 = vmatprep.subr.mxu0 0.0
    %294 = vmatpush2.msra.mxu0 0.0
    %295 = vmatprep.subr.mxu0 0.0
    %296 = vmatpush2.msra.mxu0 0.0
    %297 = vmatprep.mubr.f32.mxu0 0.0
    %298 = vmatmul.mubr.f32.gmra.mxu0 %v227
    %v299 = vpop.f32.mrf.mxu0
    %v300 = vadd.f32 %v223, %v299
    %v301 = vpop.f32.mrf.mxu0
    %302 = vdwg.mxu0
    %v303 = vmax.f32 %v300, 0.0
    %v304 = vld [vmem:[%s5] sm:$0x1f]
    %v305 = vld [vmem:[#allocation7] sm:$0x1]
    %v307 = vlaneseq
    %v308 = vshrl.u32 %v307, 7
    %v309 = vsub.s32 0, %v308
    %v310 = vrot.slane %v305, %v309
    %v313 = vsel %vm225, %v303, 0
    %v316 = vsel %vm229, %v304, 0
    %318 = vmatprep.subr.mxu0 0.0
    %319 = vmatpush1.msra.mxu0 0.0
    %320 = vmatprep.subr.mxu0 0.0
    %321 = vmatpush1.msra.mxu0 0.0
    %322 = vmatprep.subr.mxu0 0.0
    %323 = vmatpush1.msra.mxu0 0.0
    %324 = vmatprep.subr.mxu0 0.0
    %325 = vmatpush1.msra.mxu0 0.0
    %326 = vmatprep.subr.mxu0 0.0
    %327 = vmatpush1.msra.mxu0 0.0
    %328 = vmatprep.subr.mxu0 0.0
    %329 = vmatpush1.msra.mxu0 0.0
    %330 = vmatprep.subr.mxu0 0.0
    %331 = vmatpush1.msra.mxu0 0.0
    %332 = vmatprep.subr.mxu0 0.0
    %333 = vmatpush1.msra.mxu0 0.0
    %334 = vmatprep.subr.mxu0 0.0
    %335 = vmatpush1.msra.mxu0 0.0
    %336 = vmatprep.subr.mxu0 0.0
    %337 = vmatpush1.msra.mxu0 0.0
    %338 = vmatprep.subr.mxu0 0.0
    %339 = vmatpush1.msra.mxu0 0.0
    %340 = vmatprep.subr.mxu0 0.0
    %341 = vmatpush1.msra.mxu0 0.0
    %342 = vmatprep.subr.mxu0 0.0
    %343 = vmatpush1.msra.mxu0 0.0
    %344 = vmatprep.subr.mxu0 0.0
    %345 = vmatpush1.msra.mxu0 0.0
    %346 = vmatprep.subr.mxu0 0.0
    %347 = vmatpush1.msra.mxu0 0.0
    %348 = vmatprep.subr.mxu0 0.0
    %349 = vmatpush1.msra.mxu0 %v316
    %350 = vmatprep.subr.mxu0 0.0
    %351 = vmatpush2.msra.mxu0 0.0
    %352 = vmatprep.subr.mxu0 0.0
    %353 = vmatpush2.msra.mxu0 0.0
    %354 = vmatprep.subr.mxu0 0.0
    %355 = vmatpush2.msra.mxu0 0.0
    %356 = vmatprep.subr.mxu0 0.0
    %357 = vmatpush2.msra.mxu0 0.0
    %358 = vmatprep.subr.mxu0 0.0
    %359 = vmatpush2.msra.mxu0 0.0
    %360 = vmatprep.subr.mxu0 0.0
    %361 = vmatpush2.msra.mxu0 0.0
    %362 = vmatprep.subr.mxu0 0.0
    %363 = vmatpush2.msra.mxu0 0.0
    %364 = vmatprep.subr.mxu0 0.0
    %365 = vmatpush2.msra.mxu0 0.0
    %366 = vmatprep.subr.mxu0 0.0
    %367 = vmatpush2.msra.mxu0 0.0
    %368 = vmatprep.subr.mxu0 0.0
    %369 = vmatpush2.msra.mxu0 0.0
    %370 = vmatprep.subr.mxu0 0.0
    %371 = vmatpush2.msra.mxu0 0.0
    %372 = vmatprep.subr.mxu0 0.0
    %373 = vmatpush2.msra.mxu0 0.0
    %374 = vmatprep.subr.mxu0 0.0
    %375 = vmatpush2.msra.mxu0 0.0
    %376 = vmatprep.subr.mxu0 0.0
    %377 = vmatpush2.msra.mxu0 0.0
    %378 = vmatprep.subr.mxu0 0.0
    %379 = vmatpush2.msra.mxu0 0.0
    %380 = vmatprep.subr.mxu0 0.0
    %381 = vmatpush2.msra.mxu0 0.0
    %382 = vmatprep.mubr.f32.mxu0 0.0
    %383 = vmatmul.mubr.f32.gmra.mxu0 %v313
    %v384 = vpop.f32.mrf.mxu0
    %v385 = vadd.f32 %v310, %v384
    %v386 = vpop.f32.mrf.mxu0
    %387 = vdwg.mxu0
    %v388 = vld [vmem:[%s7] sm:$0x7]
    %v389 = vld [vmem:[%s8] sm:$0x1f]
    %v391 = vsel %vm229, %v389, 0
    %393 = vmatprep.subr.mxu0 0.0
    %394 = vmatpush1.msra.mxu0 0.0
    %395 = vmatprep.subr.mxu0 0.0
    %396 = vmatpush1.msra.mxu0 0.0
    %397 = vmatprep.subr.mxu0 0.0
    %398 = vmatpush1.msra.mxu0 0.0
    %399 = vmatprep.subr.mxu0 0.0
    %400 = vmatpush1.msra.mxu0 0.0
    %401 = vmatprep.subr.mxu0 0.0
    %402 = vmatpush1.msra.mxu0 0.0
    %403 = vmatprep.subr.mxu0 0.0
    %404 = vmatpush1.msra.mxu0 0.0
    %405 = vmatprep.subr.mxu0 0.0
    %406 = vmatpush1.msra.mxu0 0.0
    %407 = vmatprep.subr.mxu0 0.0
    %408 = vmatpush1.msra.mxu0 0.0
    %409 = vmatprep.subr.mxu0 0.0
    %410 = vmatpush1.msra.mxu0 0.0
    %411 = vmatprep.subr.mxu0 0.0
    %412 = vmatpush1.msra.mxu0 0.0
    %413 = vmatprep.subr.mxu0 0.0
    %414 = vmatpush1.msra.mxu0 0.0
    %415 = vmatprep.subr.mxu0 0.0
    %416 = vmatpush1.msra.mxu0 0.0
    %417 = vmatprep.subr.mxu0 0.0
    %418 = vmatpush1.msra.mxu0 0.0
    %419 = vmatprep.subr.mxu0 0.0
    %420 = vmatpush1.msra.mxu0 0.0
    %421 = vmatprep.subr.mxu0 0.0
    %422 = vmatpush1.msra.mxu0 0.0
    %423 = vmatprep.subr.mxu0 0.0
    %424 = vmatpush1.msra.mxu0 %v391
    %425 = vmatprep.subr.mxu0 0.0
    %426 = vmatpush2.msra.mxu0 0.0
    %427 = vmatprep.subr.mxu0 0.0
    %428 = vmatpush2.msra.mxu0 0.0
    %429 = vmatprep.subr.mxu0 0.0
    %430 = vmatpush2.msra.mxu0 0.0
    %431 = vmatprep.subr.mxu0 0.0
    %432 = vmatpush2.msra.mxu0 0.0
    %433 = vmatprep.subr.mxu0 0.0
    %434 = vmatpush2.msra.mxu0 0.0
    %435 = vmatprep.subr.mxu0 0.0
    %436 = vmatpush2.msra.mxu0 0.0
    %437 = vmatprep.subr.mxu0 0.0
    %438 = vmatpush2.msra.mxu0 0.0
    %439 = vmatprep.subr.mxu0 0.0
    %440 = vmatpush2.msra.mxu0 0.0
    %441 = vmatprep.subr.mxu0 0.0
    %442 = vmatpush2.msra.mxu0 0.0
    %443 = vmatprep.subr.mxu0 0.0
    %444 = vmatpush2.msra.mxu0 0.0
    %445 = vmatprep.subr.mxu0 0.0
    %446 = vmatpush2.msra.mxu0 0.0
    %447 = vmatprep.subr.mxu0 0.0
    %448 = vmatpush2.msra.mxu0 0.0
    %449 = vmatprep.subr.mxu0 0.0
    %450 = vmatpush2.msra.mxu0 0.0
    %451 = vmatprep.subr.mxu0 0.0
    %452 = vmatpush2.msra.mxu0 0.0
    %453 = vmatprep.subr.mxu0 0.0
    %454 = vmatpush2.msra.mxu0 0.0
    %455 = vmatprep.subr.mxu0 0.0
    %456 = vmatpush2.msra.mxu0 0.0
    %457 = vmatprep.mubr.f32.mxu0 0.0
    %458 = vmatmul.mubr.f32.gmra.mxu0 %v313
    %v459 = vpop.f32.mrf.mxu0
    %v460 = vadd.f32 0.0, %v459
    %v461 = vpop.f32.mrf.mxu0
    %462 = vdwg.mxu0
    %v464 = vsel %vm142, %v388, 0
    %466 = vmatprep.subr.mxu0 0.0
    %467 = vmatpush1.msra.mxu0 0.0
    %468 = vmatprep.subr.mxu0 0.0
    %469 = vmatpush1.msra.mxu0 0.0
    %470 = vmatprep.subr.mxu0 0.0
    %471 = vmatpush1.msra.mxu0 0.0
    %472 = vmatprep.subr.mxu0 0.0
    %473 = vmatpush1.msra.mxu0 0.0
    %474 = vmatprep.subr.mxu0 0.0
    %475 = vmatpush1.msra.mxu0 0.0
    %476 = vmatprep.subr.mxu0 0.0
    %477 = vmatpush1.msra.mxu0 0.0
    %478 = vmatprep.subr.mxu0 0.0
    %479 = vmatpush1.msra.mxu0 0.0
    %480 = vmatprep.subr.mxu0 0.0
    %481 = vmatpush1.msra.mxu0 0.0
    %482 = vmatprep.subr.mxu0 0.0
    %483 = vmatpush1.msra.mxu0 0.0
    %484 = vmatprep.subr.mxu0 0.0
    %485 = vmatpush1.msra.mxu0 0.0
    %486 = vmatprep.subr.mxu0 0.0
    %487 = vmatpush1.msra.mxu0 0.0
    %488 = vmatprep.subr.mxu0 0.0
    %489 = vmatpush1.msra.mxu0 0.0
    %490 = vmatprep.subr.mxu0 0.0
    %491 = vmatpush1.msra.mxu0 0.0
    %492 = vmatprep.subr.mxu0 0.0
    %493 = vmatpush1.msra.mxu0 0.0
    %494 = vmatprep.subr.mxu0 0.0
    %495 = vmatpush1.msra.mxu0 0.0
    %496 = vmatprep.subr.mxu0 0.0
    %497 = vmatpush1.msra.mxu0 %v464
    %498 = vmatprep.subr.mxu0 0.0
    %499 = vmatpush2.msra.mxu0 0.0
    %500 = vmatprep.subr.mxu0 0.0
    %501 = vmatpush2.msra.mxu0 0.0
    %502 = vmatprep.subr.mxu0 0.0
    %503 = vmatpush2.msra.mxu0 0.0
    %504 = vmatprep.subr.mxu0 0.0
    %505 = vmatpush2.msra.mxu0 0.0
    %506 = vmatprep.subr.mxu0 0.0
    %507 = vmatpush2.msra.mxu0 0.0
    %508 = vmatprep.subr.mxu0 0.0
    %509 = vmatpush2.msra.mxu0 0.0
    %510 = vmatprep.subr.mxu0 0.0
    %511 = vmatpush2.msra.mxu0 0.0
    %512 = vmatprep.subr.mxu0 0.0
    %513 = vmatpush2.msra.mxu0 0.0
    %514 = vmatprep.subr.mxu0 0.0
    %515 = vmatpush2.msra.mxu0 0.0
    %516 = vmatprep.subr.mxu0 0.0
    %517 = vmatpush2.msra.mxu0 0.0
    %518 = vmatprep.subr.mxu0 0.0
    %519 = vmatpush2.msra.mxu0 0.0
    %520 = vmatprep.subr.mxu0 0.0
    %521 = vmatpush2.msra.mxu0 0.0
    %522 = vmatprep.subr.mxu0 0.0
    %523 = vmatpush2.msra.mxu0 0.0
    %524 = vmatprep.subr.mxu0 0.0
    %525 = vmatpush2.msra.mxu0 0.0
    %526 = vmatprep.subr.mxu0 0.0
    %527 = vmatpush2.msra.mxu0 0.0
    %528 = vmatprep.subr.mxu0 0.0
    %529 = vmatpush2.msra.mxu0 0.0
    %530 = vmatprep.mubr.f32.mxu0 0.0
    %531 = vmatmul.mubr.f32.gmra.mxu0 %v140
    %v532 = vpop.f32.mrf.mxu0
    %v533 = vadd.f32 %v460, %v532
    %v534 = vpop.f32.mrf.mxu0
    %535 = vdwg.mxu0
    %v536 = vld [vmem:[#allocation9] sm:$0x1]
    %v538 = vlaneseq
    %v539 = vshrl.u32 %v538, 7
    %v540 = vsub.s32 0, %v539
    %v541 = vrot.slane %v536, %v540
    %v543 = vadd.f32 %v533, %v541
    %v544 = vmax.f32 %v543, 0.0
    %v545 = vld [vmem:[%s10] sm:$0xff]
    %v546 = vld [vmem:[%s11] sm:$0x1]
    %v548 = vlaneseq
    %v549 = vshrl.u32 %v548, 7
    %v550 = vsub.s32 0, %v549
    %v551 = vrot.slane %v546, %v550
    %vm553 = vcmask 64512
    %v555 = vsel %vm553, %v544, 0
    %557 = vmatprep.subr.mxu0 0.0
    %558 = vmatpush1.msra.mxu0 0.0
    %559 = vmatprep.subr.mxu0 0.0
    %560 = vmatpush1.msra.mxu0 0.0
    %561 = vmatprep.subr.mxu0 0.0
    %562 = vmatpush1.msra.mxu0 0.0
    %563 = vmatprep.subr.mxu0 0.0
    %564 = vmatpush1.msra.mxu0 0.0
    %565 = vmatprep.subr.mxu0 0.0
    %566 = vmatpush1.msra.mxu0 0.0
    %567 = vmatprep.subr.mxu0 0.0
    %568 = vmatpush1.msra.mxu0 0.0
    %569 = vmatprep.subr.mxu0 0.0
    %570 = vmatpush1.msra.mxu0 0.0
    %571 = vmatprep.subr.mxu0 0.0
    %572 = vmatpush1.msra.mxu0 0.0
    %573 = vmatprep.subr.mxu0 0.0
    %574 = vmatpush1.msra.mxu0 0.0
    %575 = vmatprep.subr.mxu0 0.0
    %576 = vmatpush1.msra.mxu0 0.0
    %577 = vmatprep.subr.mxu0 0.0
    %578 = vmatpush1.msra.mxu0 0.0
    %579 = vmatprep.subr.mxu0 0.0
    %580 = vmatpush1.msra.mxu0 0.0
    %581 = vmatprep.subr.mxu0 0.0
    %582 = vmatpush1.msra.mxu0 0.0
    %583 = vmatprep.subr.mxu0 0.0
    %584 = vmatpush1.msra.mxu0 0.0
    %585 = vmatprep.subr.mxu0 0.0
    %586 = vmatpush1.msra.mxu0 0.0
    %587 = vmatprep.subr.mxu0 0.0
    %588 = vmatpush1.msra.mxu0 %v545
    %589 = vmatprep.subr.mxu0 0.0
    %590 = vmatpush2.msra.mxu0 0.0
    %591 = vmatprep.subr.mxu0 0.0
    %592 = vmatpush2.msra.mxu0 0.0
    %593 = vmatprep.subr.mxu0 0.0
    %594 = vmatpush2.msra.mxu0 0.0
    %595 = vmatprep.subr.mxu0 0.0
    %596 = vmatpush2.msra.mxu0 0.0
    %597 = vmatprep.subr.mxu0 0.0
    %598 = vmatpush2.msra.mxu0 0.0
    %599 = vmatprep.subr.mxu0 0.0
    %600 = vmatpush2.msra.mxu0 0.0
    %601 = vmatprep.subr.mxu0 0.0
    %602 = vmatpush2.msra.mxu0 0.0
    %603 = vmatprep.subr.mxu0 0.0
    %604 = vmatpush2.msra.mxu0 0.0
    %605 = vmatprep.subr.mxu0 0.0
    %606 = vmatpush2.msra.mxu0 0.0
    %607 = vmatprep.subr.mxu0 0.0
    %608 = vmatpush2.msra.mxu0 0.0
    %609 = vmatprep.subr.mxu0 0.0
    %610 = vmatpush2.msra.mxu0 0.0
    %611 = vmatprep.subr.mxu0 0.0
    %612 = vmatpush2.msra.mxu0 0.0
    %613 = vmatprep.subr.mxu0 0.0
    %614 = vmatpush2.msra.mxu0 0.0
    %615 = vmatprep.subr.mxu0 0.0
    %616 = vmatpush2.msra.mxu0 0.0
    %617 = vmatprep.subr.mxu0 0.0
    %618 = vmatpush2.msra.mxu0 0.0
    %619 = vmatprep.subr.mxu0 0.0
    %620 = vmatpush2.msra.mxu0 0.0
    %621 = vmatprep.mubr.f32.mxu0 0.0
    %622 = vmatmul.mubr.f32.gmra.mxu0 %v555
    %v623 = vpop.f32.mrf.mxu0
    %v624 = vadd.f32 %v551, %v623
    %v625 = vpop.f32.mrf.mxu0
    %626 = vdwg.mxu0
    %v627 = vmax.f32 %v624, 0.0
    %v628 = vld [vmem:[%s12] sm:$0xff]
    %v629 = vld [vmem:[%s13] sm:$0x1]
    %v631 = vlaneseq
    %v632 = vshrl.u32 %v631, 7
    %v633 = vsub.s32 0, %v632
    %v634 = vrot.slane %v629, %v633
    %v637 = vsel %vm553, %v627, 0
    %639 = vmatprep.subr.mxu0 0.0
    %640 = vmatpush1.msra.mxu0 0.0
    %641 = vmatprep.subr.mxu0 0.0
    %642 = vmatpush1.msra.mxu0 0.0
    %643 = vmatprep.subr.mxu0 0.0
    %644 = vmatpush1.msra.mxu0 0.0
    %645 = vmatprep.subr.mxu0 0.0
    %646 = vmatpush1.msra.mxu0 0.0
    %647 = vmatprep.subr.mxu0 0.0
    %648 = vmatpush1.msra.mxu0 0.0
    %649 = vmatprep.subr.mxu0 0.0
    %650 = vmatpush1.msra.mxu0 0.0
    %651 = vmatprep.subr.mxu0 0.0
    %652 = vmatpush1.msra.mxu0 0.0
    %653 = vmatprep.subr.mxu0 0.0
    %654 = vmatpush1.msra.mxu0 0.0
    %655 = vmatprep.subr.mxu0 0.0
    %656 = vmatpush1.msra.mxu0 0.0
    %657 = vmatprep.subr.mxu0 0.0
    %658 = vmatpush1.msra.mxu0 0.0
    %659 = vmatprep.subr.mxu0 0.0
    %660 = vmatpush1.msra.mxu0 0.0
    %661 = vmatprep.subr.mxu0 0.0
    %662 = vmatpush1.msra.mxu0 0.0
    %663 = vmatprep.subr.mxu0 0.0
    %664 = vmatpush1.msra.mxu0 0.0
    %665 = vmatprep.subr.mxu0 0.0
    %666 = vmatpush1.msra.mxu0 0.0
    %667 = vmatprep.subr.mxu0 0.0
    %668 = vmatpush1.msra.mxu0 0.0
    %669 = vmatprep.subr.mxu0 0.0
    %670 = vmatpush1.msra.mxu0 %v628
    %671 = vmatprep.subr.mxu0 0.0
    %672 = vmatpush2.msra.mxu0 0.0
    %673 = vmatprep.subr.mxu0 0.0
    %674 = vmatpush2.msra.mxu0 0.0
    %675 = vmatprep.subr.mxu0 0.0
    %676 = vmatpush2.msra.mxu0 0.0
    %677 = vmatprep.subr.mxu0 0.0
    %678 = vmatpush2.msra.mxu0 0.0
    %679 = vmatprep.subr.mxu0 0.0
    %680 = vmatpush2.msra.mxu0 0.0
    %681 = vmatprep.subr.mxu0 0.0
    %682 = vmatpush2.msra.mxu0 0.0
    %683 = vmatprep.subr.mxu0 0.0
    %684 = vmatpush2.msra.mxu0 0.0
    %685 = vmatprep.subr.mxu0 0.0
    %686 = vmatpush2.msra.mxu0 0.0
    %687 = vmatprep.subr.mxu0 0.0
    %688 = vmatpush2.msra.mxu0 0.0
    %689 = vmatprep.subr.mxu0 0.0
    %690 = vmatpush2.msra.mxu0 0.0
    %691 = vmatprep.subr.mxu0 0.0
    %692 = vmatpush2.msra.mxu0 0.0
    %693 = vmatprep.subr.mxu0 0.0
    %694 = vmatpush2.msra.mxu0 0.0
    %695 = vmatprep.subr.mxu0 0.0
    %696 = vmatpush2.msra.mxu0 0.0
    %697 = vmatprep.subr.mxu0 0.0
    %698 = vmatpush2.msra.mxu0 0.0
    %699 = vmatprep.subr.mxu0 0.0
    %700 = vmatpush2.msra.mxu0 0.0
    %701 = vmatprep.subr.mxu0 0.0
    %702 = vmatpush2.msra.mxu0 0.0
    %703 = vmatprep.mubr.f32.mxu0 0.0
    %704 = vmatmul.mubr.f32.gmra.mxu0 %v637
    %v705 = vpop.f32.mrf.mxu0
    %v706 = vadd.f32 %v634, %v705
    %v707 = vpop.f32.mrf.mxu0
    %708 = vdwg.mxu0
    %v709 = vld [vmem:[%s14] sm:$0x3f]
    %vm710 = vcmask 48128
    %v712 = vsel %vm710, %v706, 0
    %vm714 = vcmask 1045504
    %v716 = vsel %vm714, %v709, 0
    %718 = vmatprep.subr.mxu0 0.0
    %719 = vmatpush1.msra.mxu0 0.0
    %720 = vmatprep.subr.mxu0 0.0
    %721 = vmatpush1.msra.mxu0 0.0
    %722 = vmatprep.subr.mxu0 0.0
    %723 = vmatpush1.msra.mxu0 0.0
    %724 = vmatprep.subr.mxu0 0.0
    %725 = vmatpush1.msra.mxu0 0.0
    %726 = vmatprep.subr.mxu0 0.0
    %727 = vmatpush1.msra.mxu0 0.0
    %728 = vmatprep.subr.mxu0 0.0
    %729 = vmatpush1.msra.mxu0 0.0
    %730 = vmatprep.subr.mxu0 0.0
    %731 = vmatpush1.msra.mxu0 0.0
    %732 = vmatprep.subr.mxu0 0.0
    %733 = vmatpush1.msra.mxu0 0.0
    %734 = vmatprep.subr.mxu0 0.0
    %735 = vmatpush1.msra.mxu0 0.0
    %736 = vmatprep.subr.mxu0 0.0
    %737 = vmatpush1.msra.mxu0 0.0
    %738 = vmatprep.subr.mxu0 0.0
    %739 = vmatpush1.msra.mxu0 0.0
    %740 = vmatprep.subr.mxu0 0.0
    %741 = vmatpush1.msra.mxu0 0.0
    %742 = vmatprep.subr.mxu0 0.0
    %743 = vmatpush1.msra.mxu0 0.0
    %744 = vmatprep.subr.mxu0 0.0
    %745 = vmatpush1.msra.mxu0 0.0
    %746 = vmatprep.subr.mxu0 0.0
    %747 = vmatpush1.msra.mxu0 0.0
    %748 = vmatprep.subr.mxu0 0.0
    %749 = vmatpush1.msra.mxu0 %v716
    %750 = vmatprep.subr.mxu0 0.0
    %751 = vmatpush2.msra.mxu0 0.0
    %752 = vmatprep.subr.mxu0 0.0
    %753 = vmatpush2.msra.mxu0 0.0
    %754 = vmatprep.subr.mxu0 0.0
    %755 = vmatpush2.msra.mxu0 0.0
    %756 = vmatprep.subr.mxu0 0.0
    %757 = vmatpush2.msra.mxu0 0.0
    %758 = vmatprep.subr.mxu0 0.0
    %759 = vmatpush2.msra.mxu0 0.0
    %760 = vmatprep.subr.mxu0 0.0
    %761 = vmatpush2.msra.mxu0 0.0
    %762 = vmatprep.subr.mxu0 0.0
    %763 = vmatpush2.msra.mxu0 0.0
    %764 = vmatprep.subr.mxu0 0.0
    %765 = vmatpush2.msra.mxu0 0.0
    %766 = vmatprep.subr.mxu0 0.0
    %767 = vmatpush2.msra.mxu0 0.0
    %768 = vmatprep.subr.mxu0 0.0
    %769 = vmatpush2.msra.mxu0 0.0
    %770 = vmatprep.subr.mxu0 0.0
    %771 = vmatpush2.msra.mxu0 0.0
    %772 = vmatprep.subr.mxu0 0.0
    %773 = vmatpush2.msra.mxu0 0.0
    %774 = vmatprep.subr.mxu0 0.0
    %775 = vmatpush2.msra.mxu0 0.0
    %776 = vmatprep.subr.mxu0 0.0
    %777 = vmatpush2.msra.mxu0 0.0
    %778 = vmatprep.subr.mxu0 0.0
    %779 = vmatpush2.msra.mxu0 0.0
    %780 = vmatprep.subr.mxu0 0.0
    %781 = vmatpush2.msra.mxu0 0.0
    %782 = vmatprep.mubr.f32.mxu0 0.0
    %783 = vmatmul.mubr.f32.gmra.mxu0 %v712
    %v784 = vpop.f32.mrf.mxu0
    %v785 = vadd.f32 0.0, %v784
    %v786 = vpop.f32.mrf.mxu0
    %787 = vdwg.mxu0
    %v788 = vld [vmem:[%s15] sm:$0x7]
    %v789 = vld [vmem:[%s16] sm:$0x1f]
    %v791 = vsel %vm229, %v789, 0
    %793 = vmatprep.subr.mxu0 0.0
    %794 = vmatpush1.msra.mxu0 0.0
    %795 = vmatprep.subr.mxu0 0.0
    %796 = vmatpush1.msra.mxu0 0.0
    %797 = vmatprep.subr.mxu0 0.0
    %798 = vmatpush1.msra.mxu0 0.0
    %799 = vmatprep.subr.mxu0 0.0
    %800 = vmatpush1.msra.mxu0 0.0
    %801 = vmatprep.subr.mxu0 0.0
    %802 = vmatpush1.msra.mxu0 0.0
    %803 = vmatprep.subr.mxu0 0.0
    %804 = vmatpush1.msra.mxu0 0.0
    %805 = vmatprep.subr.mxu0 0.0
    %806 = vmatpush1.msra.mxu0 0.0
    %807 = vmatprep.subr.mxu0 0.0
    %808 = vmatpush1.msra.mxu0 0.0
    %809 = vmatprep.subr.mxu0 0.0
    %810 = vmatpush1.msra.mxu0 0.0
    %811 = vmatprep.subr.mxu0 0.0
    %812 = vmatpush1.msra.mxu0 0.0
    %813 = vmatprep.subr.mxu0 0.0
    %814 = vmatpush1.msra.mxu0 0.0
    %815 = vmatprep.subr.mxu0 0.0
    %816 = vmatpush1.msra.mxu0 0.0
    %817 = vmatprep.subr.mxu0 0.0
    %818 = vmatpush1.msra.mxu0 0.0
    %819 = vmatprep.subr.mxu0 0.0
    %820 = vmatpush1.msra.mxu0 0.0
    %821 = vmatprep.subr.mxu0 0.0
    %822 = vmatpush1.msra.mxu0 0.0
    %823 = vmatprep.subr.mxu0 0.0
    %824 = vmatpush1.msra.mxu0 %v791
    %825 = vmatprep.subr.mxu0 0.0
    %826 = vmatpush2.msra.mxu0 0.0
    %827 = vmatprep.subr.mxu0 0.0
    %828 = vmatpush2.msra.mxu0 0.0
    %829 = vmatprep.subr.mxu0 0.0
    %830 = vmatpush2.msra.mxu0 0.0
    %831 = vmatprep.subr.mxu0 0.0
    %832 = vmatpush2.msra.mxu0 0.0
    %833 = vmatprep.subr.mxu0 0.0
    %834 = vmatpush2.msra.mxu0 0.0
    %835 = vmatprep.subr.mxu0 0.0
    %836 = vmatpush2.msra.mxu0 0.0
    %837 = vmatprep.subr.mxu0 0.0
    %838 = vmatpush2.msra.mxu0 0.0
    %839 = vmatprep.subr.mxu0 0.0
    %840 = vmatpush2.msra.mxu0 0.0
    %841 = vmatprep.subr.mxu0 0.0
    %842 = vmatpush2.msra.mxu0 0.0
    %843 = vmatprep.subr.mxu0 0.0
    %844 = vmatpush2.msra.mxu0 0.0
    %845 = vmatprep.subr.mxu0 0.0
    %846 = vmatpush2.msra.mxu0 0.0
    %847 = vmatprep.subr.mxu0 0.0
    %848 = vmatpush2.msra.mxu0 0.0
    %849 = vmatprep.subr.mxu0 0.0
    %850 = vmatpush2.msra.mxu0 0.0
    %851 = vmatprep.subr.mxu0 0.0
    %852 = vmatpush2.msra.mxu0 0.0
    %853 = vmatprep.subr.mxu0 0.0
    %854 = vmatpush2.msra.mxu0 0.0
    %855 = vmatprep.subr.mxu0 0.0
    %856 = vmatpush2.msra.mxu0 0.0
    %857 = vmatprep.mubr.f32.mxu0 0.0
    %858 = vmatmul.mubr.f32.gmra.mxu0 %v313
    %v859 = vpop.f32.mrf.mxu0
    %v860 = vadd.f32 0.0, %v859
    %v861 = vpop.f32.mrf.mxu0
    %862 = vdwg.mxu0
    %v864 = vsel %vm142, %v788, 0
    %866 = vmatprep.subr.mxu0 0.0
    %867 = vmatpush1.msra.mxu0 0.0
    %868 = vmatprep.subr.mxu0 0.0
    %869 = vmatpush1.msra.mxu0 0.0
    %870 = vmatprep.subr.mxu0 0.0
    %871 = vmatpush1.msra.mxu0 0.0
    %872 = vmatprep.subr.mxu0 0.0
    %873 = vmatpush1.msra.mxu0 0.0
    %874 = vmatprep.subr.mxu0 0.0
    %875 = vmatpush1.msra.mxu0 0.0
    %876 = vmatprep.subr.mxu0 0.0
    %877 = vmatpush1.msra.mxu0 0.0
    %878 = vmatprep.subr.mxu0 0.0
    %879 = vmatpush1.msra.mxu0 0.0
    %880 = vmatprep.subr.mxu0 0.0
    %881 = vmatpush1.msra.mxu0 0.0
    %882 = vmatprep.subr.mxu0 0.0
    %883 = vmatpush1.msra.mxu0 0.0
    %884 = vmatprep.subr.mxu0 0.0
    %885 = vmatpush1.msra.mxu0 0.0
    %886 = vmatprep.subr.mxu0 0.0
    %887 = vmatpush1.msra.mxu0 0.0
    %888 = vmatprep.subr.mxu0 0.0
    %889 = vmatpush1.msra.mxu0 0.0
    %890 = vmatprep.subr.mxu0 0.0
    %891 = vmatpush1.msra.mxu0 0.0
    %892 = vmatprep.subr.mxu0 0.0
    %893 = vmatpush1.msra.mxu0 0.0
    %894 = vmatprep.subr.mxu0 0.0
    %895 = vmatpush1.msra.mxu0 0.0
    %896 = vmatprep.subr.mxu0 0.0
    %897 = vmatpush1.msra.mxu0 %v864
    %898 = vmatprep.subr.mxu0 0.0
    %899 = vmatpush2.msra.mxu0 0.0
    %900 = vmatprep.subr.mxu0 0.0
    %901 = vmatpush2.msra.mxu0 0.0
    %902 = vmatprep.subr.mxu0 0.0
    %903 = vmatpush2.msra.mxu0 0.0
    %904 = vmatprep.subr.mxu0 0.0
    %905 = vmatpush2.msra.mxu0 0.0
    %906 = vmatprep.subr.mxu0 0.0
    %907 = vmatpush2.msra.mxu0 0.0
    %908 = vmatprep.subr.mxu0 0.0
    %909 = vmatpush2.msra.mxu0 0.0
    %910 = vmatprep.subr.mxu0 0.0
    %911 = vmatpush2.msra.mxu0 0.0
    %912 = vmatprep.subr.mxu0 0.0
    %913 = vmatpush2.msra.mxu0 0.0
    %914 = vmatprep.subr.mxu0 0.0
    %915 = vmatpush2.msra.mxu0 0.0
    %916 = vmatprep.subr.mxu0 0.0
    %917 = vmatpush2.msra.mxu0 0.0
    %918 = vmatprep.subr.mxu0 0.0
    %919 = vmatpush2.msra.mxu0 0.0
    %920 = vmatprep.subr.mxu0 0.0
    %921 = vmatpush2.msra.mxu0 0.0
    %922 = vmatprep.subr.mxu0 0.0
    %923 = vmatpush2.msra.mxu0 0.0
    %924 = vmatprep.subr.mxu0 0.0
    %925 = vmatpush2.msra.mxu0 0.0
    %926 = vmatprep.subr.mxu0 0.0
    %927 = vmatpush2.msra.mxu0 0.0
    %928 = vmatprep.subr.mxu0 0.0
    %929 = vmatpush2.msra.mxu0 0.0
    %930 = vmatprep.mubr.f32.mxu0 0.0
    %931 = vmatmul.mubr.f32.gmra.mxu0 %v140
    %v932 = vpop.f32.mrf.mxu0
    %v933 = vadd.f32 %v860, %v932
    %v934 = vpop.f32.mrf.mxu0
    %935 = vdwg.mxu0
    %v936 = vld [vmem:[%s17] sm:$0x1]
    %v938 = vlaneseq
    %v939 = vshrl.u32 %v938, 7
    %v940 = vsub.s32 0, %v939
    %v941 = vrot.slane %v936, %v940
    %v943 = vadd.f32 %v933, %v941
    %v944 = vmax.f32 %v943, 0.0
    %v945 = vld [vmem:[%s18] sm:$0x3f]
    %v946 = vld [vmem:[%s19] sm:$0x1]
    %v948 = vlaneseq
    %v949 = vshrl.u32 %v948, 7
    %v950 = vsub.s32 0, %v949
    %v951 = vrot.slane %v946, %v950
    %v954 = vsel %vm710, %v944, 0
    %v957 = vsel %vm714, %v945, 0
    %959 = vmatprep.subr.mxu0 0.0
    %960 = vmatpush1.msra.mxu0 0.0
    %961 = vmatprep.subr.mxu0 0.0
    %962 = vmatpush1.msra.mxu0 0.0
    %963 = vmatprep.subr.mxu0 0.0
    %964 = vmatpush1.msra.mxu0 0.0
    %965 = vmatprep.subr.mxu0 0.0
    %966 = vmatpush1.msra.mxu0 0.0
    %967 = vmatprep.subr.mxu0 0.0
    %968 = vmatpush1.msra.mxu0 0.0
    %969 = vmatprep.subr.mxu0 0.0
    %970 = vmatpush1.msra.mxu0 0.0
    %971 = vmatprep.subr.mxu0 0.0
    %972 = vmatpush1.msra.mxu0 0.0
    %973 = vmatprep.subr.mxu0 0.0
    %974 = vmatpush1.msra.mxu0 0.0
    %975 = vmatprep.subr.mxu0 0.0
    %976 = vmatpush1.msra.mxu0 0.0
    %977 = vmatprep.subr.mxu0 0.0
    %978 = vmatpush1.msra.mxu0 0.0
    %979 = vmatprep.subr.mxu0 0.0
    %980 = vmatpush1.msra.mxu0 0.0
    %981 = vmatprep.subr.mxu0 0.0
    %982 = vmatpush1.msra.mxu0 0.0
    %983 = vmatprep.subr.mxu0 0.0
    %984 = vmatpush1.msra.mxu0 0.0
    %985 = vmatprep.subr.mxu0 0.0
    %986 = vmatpush1.msra.mxu0 0.0
    %987 = vmatprep.subr.mxu0 0.0
    %988 = vmatpush1.msra.mxu0 0.0
    %989 = vmatprep.subr.mxu0 0.0
    %990 = vmatpush1.msra.mxu0 %v957
    %991 = vmatprep.subr.mxu0 0.0
    %992 = vmatpush2.msra.mxu0 0.0
    %993 = vmatprep.subr.mxu0 0.0
    %994 = vmatpush2.msra.mxu0 0.0
    %995 = vmatprep.subr.mxu0 0.0
    %996 = vmatpush2.msra.mxu0 0.0
    %997 = vmatprep.subr.mxu0 0.0
    %998 = vmatpush2.msra.mxu0 0.0
    %999 = vmatprep.subr.mxu0 0.0
    %1000 = vmatpush2.msra.mxu0 0.0
    %1001 = vmatprep.subr.mxu0 0.0
    %1002 = vmatpush2.msra.mxu0 0.0
    %1003 = vmatprep.subr.mxu0 0.0
    %1004 = vmatpush2.msra.mxu0 0.0
    %1005 = vmatprep.subr.mxu0 0.0
    %1006 = vmatpush2.msra.mxu0 0.0
    %1007 = vmatprep.subr.mxu0 0.0
    %1008 = vmatpush2.msra.mxu0 0.0
    %1009 = vmatprep.subr.mxu0 0.0
    %1010 = vmatpush2.msra.mxu0 0.0
    %1011 = vmatprep.subr.mxu0 0.0
    %1012 = vmatpush2.msra.mxu0 0.0
    %1013 = vmatprep.subr.mxu0 0.0
    %1014 = vmatpush2.msra.mxu0 0.0
    %1015 = vmatprep.subr.mxu0 0.0
    %1016 = vmatpush2.msra.mxu0 0.0
    %1017 = vmatprep.subr.mxu0 0.0
    %1018 = vmatpush2.msra.mxu0 0.0
    %1019 = vmatprep.subr.mxu0 0.0
    %1020 = vmatpush2.msra.mxu0 0.0
    %1021 = vmatprep.subr.mxu0 0.0
    %1022 = vmatpush2.msra.mxu0 0.0
    %1023 = vmatprep.mubr.f32.mxu0 0.0
    %1024 = vmatmul.mubr.f32.gmra.mxu0 %v954
    %v1025 = vpop.f32.mrf.mxu0
    %v1026 = vadd.f32 %v951, %v1025
    %v1027 = vpop.f32.mrf.mxu0
    %1028 = vdwg.mxu0
    %v1029 = vmax.f32 %v1026, 0.0
    %v1030 = vld [vmem:[%s20] sm:$0x3f]
    %v1031 = vld [vmem:[%s21] sm:$0x1]
    %v1033 = vlaneseq
    %v1034 = vshrl.u32 %v1033, 7
    %v1035 = vsub.s32 0, %v1034
    %v1036 = vrot.slane %v1031, %v1035
    %v1039 = vsel %vm710, %v1029, 0
    %v1042 = vsel %vm714, %v1030, 0
    %1044 = vmatprep.subr.mxu0 0.0
    %1045 = vmatpush1.msra.mxu0 0.0
    %1046 = vmatprep.subr.mxu0 0.0
    %1047 = vmatpush1.msra.mxu0 0.0
    %1048 = vmatprep.subr.mxu0 0.0
    %1049 = vmatpush1.msra.mxu0 0.0
    %1050 = vmatprep.subr.mxu0 0.0
    %1051 = vmatpush1.msra.mxu0 0.0
    %1052 = vmatprep.subr.mxu0 0.0
    %1053 = vmatpush1.msra.mxu0 0.0
    %1054 = vmatprep.subr.mxu0 0.0
    %1055 = vmatpush1.msra.mxu0 0.0
    %1056 = vmatprep.subr.mxu0 0.0
    %1057 = vmatpush1.msra.mxu0 0.0
    %1058 = vmatprep.subr.mxu0 0.0
    %1059 = vmatpush1.msra.mxu0 0.0
    %1060 = vmatprep.subr.mxu0 0.0
    %1061 = vmatpush1.msra.mxu0 0.0
    %1062 = vmatprep.subr.mxu0 0.0
    %1063 = vmatpush1.msra.mxu0 0.0
    %1064 = vmatprep.subr.mxu0 0.0
    %1065 = vmatpush1.msra.mxu0 0.0
    %1066 = vmatprep.subr.mxu0 0.0
    %1067 = vmatpush1.msra.mxu0 0.0
    %1068 = vmatprep.subr.mxu0 0.0
    %1069 = vmatpush1.msra.mxu0 0.0
    %1070 = vmatprep.subr.mxu0 0.0
    %1071 = vmatpush1.msra.mxu0 0.0
    %1072 = vmatprep.subr.mxu0 0.0
    %1073 = vmatpush1.msra.mxu0 0.0
    %1074 = vmatprep.subr.mxu0 0.0
    %1075 = vmatpush1.msra.mxu0 %v1042
    %1076 = vmatprep.subr.mxu0 0.0
    %1077 = vmatpush2.msra.mxu0 0.0
    %1078 = vmatprep.subr.mxu0 0.0
    %1079 = vmatpush2.msra.mxu0 0.0
    %1080 = vmatprep.subr.mxu0 0.0
    %1081 = vmatpush2.msra.mxu0 0.0
    %1082 = vmatprep.subr.mxu0 0.0
    %1083 = vmatpush2.msra.mxu0 0.0
    %1084 = vmatprep.subr.mxu0 0.0
    %1085 = vmatpush2.msra.mxu0 0.0
    %1086 = vmatprep.subr.mxu0 0.0
    %1087 = vmatpush2.msra.mxu0 0.0
    %1088 = vmatprep.subr.mxu0 0.0
    %1089 = vmatpush2.msra.mxu0 0.0
    %1090 = vmatprep.subr.mxu0 0.0
    %1091 = vmatpush2.msra.mxu0 0.0
    %1092 = vmatprep.subr.mxu0 0.0
    %1093 = vmatpush2.msra.mxu0 0.0
    %1094 = vmatprep.subr.mxu0 0.0
    %1095 = vmatpush2.msra.mxu0 0.0
    %1096 = vmatprep.subr.mxu0 0.0
    %1097 = vmatpush2.msra.mxu0 0.0
    %1098 = vmatprep.subr.mxu0 0.0
    %1099 = vmatpush2.msra.mxu0 0.0
    %1100 = vmatprep.subr.mxu0 0.0
    %1101 = vmatpush2.msra.mxu0 0.0
    %1102 = vmatprep.subr.mxu0 0.0
    %1103 = vmatpush2.msra.mxu0 0.0
    %1104 = vmatprep.subr.mxu0 0.0
    %1105 = vmatpush2.msra.mxu0 0.0
    %1106 = vmatprep.subr.mxu0 0.0
    %1107 = vmatpush2.msra.mxu0 0.0
    %1108 = vmatprep.mubr.f32.mxu0 0.0
    %1109 = vmatmul.mubr.f32.gmra.mxu0 %v1039
    %v1110 = vpop.f32.mrf.mxu0
    %v1111 = vadd.f32 %v1036, %v1110
    %v1112 = vpop.f32.mrf.mxu0
    %1113 = vdwg.mxu0
    %v1114 = vadd.f32 %v385, %v785
    %v1115 = vmul.f32 %v1111, 0.1
    %v1116 = vadd.f32 %v1114, %v1115
    %vm1117 = vcmask 15360
    %1118 = vst.msk [vmem:[%s22] sm:$0xff] %vm1117, %v1116
    // Predicated region
    $region110: #{tpu_custom_call.1} parent=1 // pred_check
      _
    $region111: #{tpu_custom_call.1} parent=1 // pred_check_branch
      %1120 = sbr.rel (0) target = $region113
    $region112: #{tpu_custom_call.1} parent=1 // pred_region
      _
    $region113: #{tpu_custom_call.1} parent=1 // pred_fallthru
      _
    // Predicated region
    $region114: #{tpu_custom_call.1} parent=1 // pred_check
      _
    $region115: #{tpu_custom_call.1} parent=1 // pred_check_branch
      %1122 = sbr.rel (0) target = $region117
    $region116: #{tpu_custom_call.1} parent=1 // pred_region
      _
    $region117: #{tpu_custom_call.1} parent=1 // pred_fallthru
      _
    %1123 = vsyncpa [#allocation3], 1
    %1124 = vsyncpa [#allocation5], 1
    %1125 = vsyncpa [#allocation8], 1

</llo_original>
